<compile_context>
chip_gen: v6e
topology: v6e:2x2x1
jax: 0.10.0
libtpu: 0.0.40
codegen_flags: <defaults>
</compile_context>

<pallas_src>
import functools

import jax
import jax.numpy as jnp
from jax.experimental import pallas as pl
from jax.experimental.pallas import tpu as pltpu


def _round_up(x, m):
    return ((x + m - 1) // m) * m


def _encoder_act_kernel(x_ref, w1t_ref, b1_ref, w2t_ref, b2_ref, wp_ref, bp_ref,
                        prev_ref, upd_ref,
                        state_ref, hp_ref, rem_ref, updacc_ref, cont_ref,
                        *, max_step, threshold, n_valid):
    """Runs the full ACT loop for one row-tile of tokens.

    x_ref    (TN, D)    f32   embedded tokens (row tile)
    w1t_ref  (D, d_ff)  bf16  first FFN weight, pre-transposed (VMEM-resident)
    b1_ref   (1, d_ff)  f32
    w2t_ref  (d_ff, D)  bf16  second FFN weight, pre-transposed (VMEM-resident)
    b2_ref   (1, D)     f32
    wp_ref   (1, D)     f32   trans_halting_prob.weight
    bp_ref   (1,)       f32   trans_halting_prob.bias (SMEM scalar)
    prev_ref (TN, D)    f32   out: ACT-weighted accumulated state
    upd_ref  (TN, 1)    f32   out: number of updates per token
    state/hp/rem/updacc: VMEM scratch; cont: SMEM i32 early-exit scalar.
    """
    tn = state_ref.shape[0]

    # ---- per-tile init (scratch persists across grid steps -> reset) ----
    state_ref[...] = x_ref[...].astype(jnp.float32)
    prev_ref[...] = jnp.zeros_like(prev_ref)
    rem_ref[...] = jnp.zeros_like(rem_ref)
    updacc_ref[...] = jnp.zeros_like(updacc_ref)

    # Padding rows (global row id >= n_valid) start "already halted" so the
    # tail tile's early exit fires as soon as the real tokens halt.
    row_ids = (jax.lax.broadcasted_iota(jnp.int32, (tn, 1), 0)
               + pl.program_id(0) * tn)
    hp0 = jnp.where(row_ids < n_valid, 0.0, 2.0).astype(jnp.float32)
    hp_ref[...] = hp0
    # Continuation scalar for step 0 (== reference continue_loop_condition on
    # the all-zero halting_prob, restricted to real rows).
    cont_ref[0] = jnp.sum((hp0 < threshold).astype(jnp.int32))

    bp = bp_ref[0]  # halting-prob bias stays on the scalar path (SMEM)

    def _step(_, carry):
        # Data-dependent `break` of the reference: the count of still-running
        # tokens was produced at the end of the previous iteration (hidden
        # under its MXU work), so this is just a cheap SMEM scalar read.
        @pl.when(cont_ref[0] > 0)
        def _body():
            state = state_ref[...]              # (TN, D) f32
            hp = hp_ref[...]                    # (TN, 1) f32
            rem = rem_ref[...]                  # (TN, 1) f32

            # p = sigmoid(trans_halting_prob(state))  (VPU mul + lane reduce)
            p = jax.nn.sigmoid(
                jnp.sum(state * wp_ref[...], axis=-1, keepdims=True) + bp)

            still_running = (hp < 1.0).astype(jnp.float32)
            hp_plus = hp + p * still_running
            new_halt = (hp_plus >= threshold).astype(jnp.float32) * still_running
            still_running = (hp_plus < threshold).astype(jnp.float32) * still_running

            hp_n = hp + still_running * p
            rem_n = rem + new_halt * (1.0 - hp_n)
            hp_n = hp_n + new_halt * rem_n

            # Early-exit scalar for the NEXT iteration, issued before the MXU
            # work so the lane reduce + vreg->sreg move hides under the matmuls.
            cont_ref[0] = jnp.sum((hp_n < threshold).astype(jnp.int32))

            updacc_ref[...] = updacc_ref[...] + still_running + new_halt

            # Encoder_Layer (shared-weight position-wise FFN): bf16 on the MXU,
            # f32 accumulation, weights already transposed (no in-kernel .T).
            hidden = jnp.maximum(
                jnp.dot(state.astype(jnp.bfloat16), w1t_ref[...],
                        preferred_element_type=jnp.float32) + b1_ref[...],
                0.0)
            state_n = jnp.dot(hidden.astype(jnp.bfloat16), w2t_ref[...],
                              preferred_element_type=jnp.float32) + b2_ref[...]

            # previous_state = state * update_weights + previous_state
            update_weights = new_halt * rem_n + still_running * p   # (TN, 1)
            prev_ref[...] = prev_ref[...] + state_n * update_weights
            state_ref[...] = state_n
            hp_ref[...] = hp_n
            rem_ref[...] = rem_n

        return carry

    # max_step is small and static -> fully unroll for LLO scheduler visibility.
    jax.lax.fori_loop(0, max_step, _step, None, unroll=True)

    # Single writeback of the per-token update counts after the loop.
    # TODO(synk): a lane-dense (1, TN) layout for this output needs a
    # (TN,1)->(1,TN) relayout whose Mosaic lowering is not guaranteed; the
    # tensor is tiny so it is kept as a (TN,1) column written once per tile.
    upd_ref[...] = updacc_ref[...]


def _resident_spec(shape):
    """BlockSpec for grid-invariant (constant index_map) VMEM-resident arrays."""
    index_map = lambda i: tuple(0 for _ in shape)
    try:
        return pl.BlockSpec(shape, index_map, pipeline_mode=pl.Buffered(1))
    except TypeError:      # very old Pallas without pipeline_mode
        return pl.BlockSpec(shape, index_map)


def encoder_forward(src, embedding_matrix, params, *, max_step, threshold,
                    tile_rows=None):
    """src: (B, S) int32 token ids. Returns (previous_state, atten_list, updates_num)."""
    b, s = src.shape
    d_model = embedding_matrix.shape[1]
    n = b * s

    # Embedding lookup (glue, plain JAX).
    # TODO(synk): at production sizes the gather could be fused into the kernel
    # (PrefetchScalarGridSpec + pl.Element row gather) to avoid the (N, D) f32
    # HBM round-trip; kept as XLA glue at demo size.
    src_emb = jnp.take(embedding_matrix, src, axis=0)            # (B, S, D)
    x = src_emb.reshape(n, d_model).astype(jnp.float32)          # (N, D)

    w1, b1, w2, b2, wp, bp = params
    d_ff = w1.shape[0]

    # Pre-transpose + bf16-cast the FFN weights (MXU-native layout / dtype).
    w1t = jnp.asarray(w1, jnp.bfloat16).T                        # (D, d_ff)
    w2t = jnp.asarray(w2, jnp.bfloat16).T                        # (d_ff, D)
    b1r = jnp.asarray(b1, jnp.float32).reshape(1, d_ff)
    b2r = jnp.asarray(b2, jnp.float32).reshape(1, d_model)
    wpr = jnp.asarray(wp, jnp.float32).reshape(1, d_model)
    bpr = jnp.asarray(bp, jnp.float32).reshape(1)

    # Generation-aware VMEM budget / tile size (v5e/v6e: 128 MiB, v7x: 64 MiB).
    try:
        phys_vmem = int(pltpu.get_tpu_info().vmem_capacity_bytes)
    except Exception:
        phys_vmem = 64 << 20      # conservative v7x per-TC assumption
    if tile_rows is None:
        tile_rows = 512 if phys_vmem >= (96 << 20) else 256

    # Row tiling over the flattened token axis. Keep >= 2 tiles when there are
    # enough tokens so dimension_semantics=("parallel",) can feed both v7x TCs.
    if n <= 128:
        tn = _round_up(n, 8)                      # single small tile
    else:
        tn = _round_up(min(tile_rows, n), 128)
        half = _round_up(pl.cdiv(n, 2), 128)      # at most ~half the rows/tile
        tn = max(128, min(tn, half))
    num_tiles = pl.cdiv(n, tn)
    n_pad = num_tiles * tn
    if n_pad != n:
        # Padding rows are masked as "already halted" inside the kernel and
        # sliced off afterwards.
        x = jnp.pad(x, ((0, n_pad - n), (0, 0)))

    # VMEM estimate: weights single-buffered (Buffered(1), constant index_map),
    # row tiles double-buffered; cap below physical VMEM for compiler scratch.
    est = (2 * (w1t.size + w2t.size)                  # bf16 weights, x1 buffer
           + 4 * (b1r.size + b2r.size + wpr.size)     # f32 biases, x1 buffer
           + 2 * 2 * tn * d_model * 4                 # x in + prev out, x2 buffered
           + 2 * tn * 4                               # updates out, x2 buffered
           + tn * (d_model + 3) * 4                   # scratch state/hp/rem/updacc
           + 2 * tn * d_ff * 4                        # FFN hidden intermediates
           + (4 << 20))                               # slack
    vmem_limit = int(min(max(est, 32 << 20), int(phys_vmem * 0.85)))

    kernel = functools.partial(_encoder_act_kernel,
                               max_step=int(max_step),
                               threshold=float(threshold),
                               n_valid=int(n))

    prev_flat, upd_flat = pl.pallas_call(
        kernel,
        grid=(num_tiles,),
        out_shape=(jax.ShapeDtypeStruct((n_pad, d_model), jnp.float32),
                   jax.ShapeDtypeStruct((n_pad, 1), jnp.float32)),
        in_specs=[
            pl.BlockSpec((tn, d_model), lambda i: (i, 0)),       # x (row tile)
            _resident_spec((d_model, d_ff)),                     # w1t (resident)
            _resident_spec((1, d_ff)),                           # b1
            _resident_spec((d_ff, d_model)),                     # w2t (resident)
            _resident_spec((1, d_model)),                        # b2
            _resident_spec((1, d_model)),                        # wp
            pl.BlockSpec(memory_space=pltpu.MemorySpace.SMEM),   # bp (scalar)
        ],
        out_specs=(
            pl.BlockSpec((tn, d_model), lambda i: (i, 0)),       # previous_state
            pl.BlockSpec((tn, 1), lambda i: (i, 0)),             # updates_num
        ),
        scratch_shapes=[
            pltpu.VMEM((tn, d_model), jnp.float32),   # state
            pltpu.VMEM((tn, 1), jnp.float32),         # halting_prob
            pltpu.VMEM((tn, 1), jnp.float32),         # remainder
            pltpu.VMEM((tn, 1), jnp.float32),         # updates accumulator
            pltpu.SMEM((1,), jnp.int32),              # early-exit scalar
        ],
        compiler_params=pltpu.CompilerParams(
            dimension_semantics=("parallel",),        # row tiles are independent
            vmem_limit_bytes=vmem_limit),
    )(x, w1t, b1r, w2t, b2r, wpr, bpr)

    previous_state = prev_flat[:n].reshape(b, s, d_model)
    updates_num = upd_flat[:n, 0].reshape(b, s)
    atten_list = []   # the reference forward never appends to it
    return previous_state, atten_list, updates_num


def init_params(key, *, vocab, d_model, d_ff):
    ks = jax.random.split(key, 7)
    embedding_matrix = jax.random.normal(ks[0], (vocab, d_model), jnp.float32)
    # nn.Parameter(torch.randn(...)) shapes; scaled mildly to keep activations tame.
    w1 = jax.random.normal(ks[1], (d_ff, d_model), jnp.float32) * 0.1  # first_weight_param
    b1 = jax.random.normal(ks[2], (d_ff,), jnp.float32) * 0.1          # first_bias_param
    w2 = jax.random.normal(ks[3], (d_model, d_ff), jnp.float32) * 0.1  # second_weight_param
    b2 = jax.random.normal(ks[4], (d_model,), jnp.float32) * 0.1       # second_bias_param
    wp = jax.random.normal(ks[5], (d_model,), jnp.float32) * 0.1       # trans_halting_prob.weight
    bp = jax.random.normal(ks[6], (1,), jnp.float32) * 0.1             # trans_halting_prob.bias
    return embedding_matrix, (w1, b1, w2, b2, wp, bp)


if __name__ == "__main__":
    # Small, lane-friendly demo config (real configs should prefer 256-multiple
    # d_model/d_ff to fill the 256-wide MXU on v6e/v7x).
    BATCH, SEQ = 2, 8
    D_MODEL, D_FF = 128, 256
    VOCAB = 50
    MAX_STEP = 4
    THRESHOLD = 0.99

    key = jax.random.PRNGKey(0)
    k_emb, k_src = jax.random.split(key)
    embedding_matrix, params = init_params(k_emb, vocab=VOCAB,
                                           d_model=D_MODEL, d_ff=D_FF)
    src = jax.random.randint(k_src, (BATCH, SEQ), 0, VOCAB, dtype=jnp.int32)

    fwd = jax.jit(functools.partial(encoder_forward,
                                    max_step=MAX_STEP, threshold=THRESHOLD))
    prev_state, atten_list, updates_num = fwd(src, embedding_matrix, params)

    jax.block_until_ready(prev_state)
    jax.block_until_ready(updates_num)
    assert prev_state.shape == (BATCH, SEQ, D_MODEL)
    assert updates_num.shape == (BATCH, SEQ)
    assert bool(jnp.all(jnp.isfinite(prev_state)))
    assert bool(jnp.all((updates_num >= 1.0) & (updates_num <= MAX_STEP)))
    print("KERNEL_OK")
</pallas_src>

<mosaic_0001>
module attributes {stable_mosaic.version = 11 : i64} {
  func.func @_encoder_act_kernel(%arg0: i32, %arg1: memref<16x128xf32, #tpu.memory_space<vmem>>, %arg2: memref<128x256xbf16, #tpu.memory_space<vmem>>, %arg3: memref<1x256xf32, #tpu.memory_space<vmem>>, %arg4: memref<256x128xbf16, #tpu.memory_space<vmem>>, %arg5: memref<1x128xf32, #tpu.memory_space<vmem>>, %arg6: memref<1x128xf32, #tpu.memory_space<vmem>>, %arg7: memref<1xf32, #tpu.memory_space<smem>>, %arg8: memref<16x128xf32, #tpu.memory_space<vmem>>, %arg9: memref<16x1xf32, #tpu.memory_space<vmem>>, %arg10: memref<16x128xf32, #tpu.memory_space<vmem>>, %arg11: memref<16x1xf32, #tpu.memory_space<vmem>>, %arg12: memref<16x1xf32, #tpu.memory_space<vmem>>, %arg13: memref<16x1xf32, #tpu.memory_space<vmem>>, %arg14: memref<1xi32, #tpu.memory_space<smem>>) attributes {dimension_semantics = [#tpu.dimension_semantics<parallel>], iteration_bounds = array<i64: 1>, scalar_prefetch = 0 : i64, scratch_operands = 5 : i64, tpu.core_type = #tpu.core_type<tc>, window_params = [{transform_indices = @transform_0, window_bounds = array<i64: 16, 128>}, {pipeline_mode = #tpu.pipeline_mode<synchronous>, transform_indices = @transform_1, window_bounds = array<i64: 128, 256>}, {pipeline_mode = #tpu.pipeline_mode<synchronous>, transform_indices = @transform_2, window_bounds = array<i64: 1, 256>}, {pipeline_mode = #tpu.pipeline_mode<synchronous>, transform_indices = @transform_3, window_bounds = array<i64: 256, 128>}, {pipeline_mode = #tpu.pipeline_mode<synchronous>, transform_indices = @transform_4, window_bounds = array<i64: 1, 128>}, {pipeline_mode = #tpu.pipeline_mode<synchronous>, transform_indices = @transform_5, window_bounds = array<i64: 1, 128>}, {transform_indices = @transform_6, window_bounds = array<i64: 1>}, {transform_indices = @transform_7, window_bounds = array<i64: 16, 128>}, {transform_indices = @transform_8, window_bounds = array<i64: 16, 1>}]} {
    %c0 = arith.constant 0 : index
    %c0_0 = arith.constant 0 : index
    %0 = vector.load %arg1[%c0, %c0_0] : memref<16x128xf32, #tpu.memory_space<vmem>>, vector<16x128xf32>
    %c0_1 = arith.constant 0 : index
    %c0_2 = arith.constant 0 : index
    %1 = vector.load %arg10[%c0_1, %c0_2] : memref<16x128xf32, #tpu.memory_space<vmem>>, vector<16x128xf32>
    tpu.vector_store %arg10[%c0_1, %c0_2], %0 {strides = array<i32>} : memref<16x128xf32, #tpu.memory_space<vmem>>, vector<16x128xf32>,
    %cst = arith.constant 0.000000e+00 : f32
    %2 = vector.broadcast %cst : f32 to vector<16x128xf32>
    %c0_3 = arith.constant 0 : index
    %c0_4 = arith.constant 0 : index
    %3 = vector.load %arg8[%c0_3, %c0_4] : memref<16x128xf32, #tpu.memory_space<vmem>>, vector<16x128xf32>
    tpu.vector_store %arg8[%c0_3, %c0_4], %2 {strides = array<i32>} : memref<16x128xf32, #tpu.memory_space<vmem>>, vector<16x128xf32>,
    %cst_5 = arith.constant 0.000000e+00 : f32
    %4 = vector.broadcast %cst_5 : f32 to vector<16x1xf32>
    %c0_6 = arith.constant 0 : index
    %c0_7 = arith.constant 0 : index
    %5 = vector.load %arg12[%c0_6, %c0_7] : memref<16x1xf32, #tpu.memory_space<vmem>>, vector<16x1xf32>
    tpu.vector_store %arg12[%c0_6, %c0_7], %4 {strides = array<i32>} : memref<16x1xf32, #tpu.memory_space<vmem>>, vector<16x1xf32>,
    %cst_8 = arith.constant 0.000000e+00 : f32
    %6 = vector.broadcast %cst_8 : f32 to vector<16x1xf32>
    %c0_9 = arith.constant 0 : index
    %c0_10 = arith.constant 0 : index
    %7 = vector.load %arg13[%c0_9, %c0_10] : memref<16x1xf32, #tpu.memory_space<vmem>>, vector<16x1xf32>
    tpu.vector_store %arg13[%c0_9, %c0_10], %6 {strides = array<i32>} : memref<16x1xf32, #tpu.memory_space<vmem>>, vector<16x1xf32>,
    %8 = tpu.iota {dimensions = array<i32: 0>} : vector<16x1xi32>
    %c16_i32 = arith.constant 16 : i32
    %9 = arith.muli %arg0, %c16_i32 : i32
    %10 = vector.broadcast %9 : i32 to vector<16x1xi32>
    %11 = arith.addi %8, %10 : vector<16x1xi32>
    %c16_i32_11 = arith.constant 16 : i32
    %12 = vector.broadcast %c16_i32_11 : i32 to vector<16x1xi32>
    %13 = arith.cmpi slt, %11, %12 : vector<16x1xi32>
    %cst_12 = arith.constant 0.000000e+00 : f32
    %cst_13 = arith.constant 2.000000e+00 : f32
    %14 = vector.broadcast %cst_12 : f32 to vector<16x1xf32>
    %15 = vector.broadcast %cst_13 : f32 to vector<16x1xf32>
    %16 = arith.select %13, %14, %15 : vector<16x1xi1>, vector<16x1xf32>
    %c0_14 = arith.constant 0 : index
    %c0_15 = arith.constant 0 : index
    %17 = vector.load %arg11[%c0_14, %c0_15] : memref<16x1xf32, #tpu.memory_space<vmem>>, vector<16x1xf32>
    tpu.vector_store %arg11[%c0_14, %c0_15], %16 {strides = array<i32>} : memref<16x1xf32, #tpu.memory_space<vmem>>, vector<16x1xf32>,
    %cst_16 = arith.constant 9.900000e-01 : f32
    %18 = vector.broadcast %cst_16 : f32 to vector<16x1xf32>
    %19 = arith.cmpf olt, %16, %18 : vector<16x1xf32>
    %20 = arith.extui %19 : vector<16x1xi1> to vector<16x1xi32>
    %21 = vector.shape_cast %20 : vector<16x1xi32> to vector<1x16x1xi32>
    %cst_17 = arith.constant dense<0> : vector<1xi32>
    %22 = vector.multi_reduction <add>, %21, %cst_17 [1, 2] : vector<1x16x1xi32> to vector<1xi32>
    %23 = vector.shape_cast %22 : vector<1xi32> to vector<1x1x1xi32>
    %24 = vector.extract %23[0, 0, 0] : i32 from vector<1x1x1xi32>
    %c0_18 = arith.constant 0 : index
    %25 = memref.load %arg14[%c0_18] : memref<1xi32, #tpu.memory_space<smem>>
    memref.store %24, %arg14[%c0_18] : memref<1xi32, #tpu.memory_space<smem>>
    %c0_19 = arith.constant 0 : index
    %26 = memref.load %arg7[%c0_19] : memref<1xf32, #tpu.memory_space<smem>>
    %c0_i32 = arith.constant 0 : i32
    %c0_20 = arith.constant 0 : index
    %27 = memref.load %arg14[%c0_20] : memref<1xi32, #tpu.memory_space<smem>>
    %c0_i32_21 = arith.constant 0 : i32
    %28 = arith.cmpi sgt, %27, %c0_i32_21 : i32
    %29 = arith.extui %28 : i1 to i32
    %c0_i32_22 = arith.constant 0 : i32
    %30 = arith.cmpi ne, %29, %c0_i32_22 : i32
    scf.if %30 {
      %c0_36 = arith.constant 0 : index
      %c0_37 = arith.constant 0 : index
      %45 = vector.load %arg10[%c0_36, %c0_37] : memref<16x128xf32, #tpu.memory_space<vmem>>, vector<16x128xf32>
      %c0_38 = arith.constant 0 : index
      %c0_39 = arith.constant 0 : index
      %46 = vector.load %arg11[%c0_38, %c0_39] : memref<16x1xf32, #tpu.memory_space<vmem>>, vector<16x1xf32>
      %c0_40 = arith.constant 0 : index
      %c0_41 = arith.constant 0 : index
      %47 = vector.load %arg12[%c0_40, %c0_41] : memref<16x1xf32, #tpu.memory_space<vmem>>, vector<16x1xf32>
      %c0_42 = arith.constant 0 : index
      %c0_43 = arith.constant 0 : index
      %48 = vector.load %arg6[%c0_42, %c0_43] : memref<1x128xf32, #tpu.memory_space<vmem>>, vector<1x128xf32>
      %49 = vector.broadcast %48 : vector<1x128xf32> to vector<16x128xf32>
      %50 = arith.mulf %45, %49 : vector<16x128xf32>
      %cst_44 = arith.constant dense<0.000000e+00> : vector<16xf32>
      %51 = vector.multi_reduction <add>, %50, %cst_44 [1] : vector<16x128xf32> to vector<16xf32>
      %52 = vector.shape_cast %51 : vector<16xf32> to vector<16x1xf32>
      %53 = vector.broadcast %26 : f32 to vector<16x1xf32>
      %54 = arith.addf %52, %53 : vector<16x1xf32>
      %55 = arith.negf %54 : vector<16x1xf32>
      %56 = math.exp %55 : vector<16x1xf32>
      %cst_45 = arith.constant 1.000000e+00 : f32
      %57 = vector.broadcast %cst_45 : f32 to vector<16x1xf32>
      %58 = arith.addf %57, %56 : vector<16x1xf32>
      %59 = arith.divf %57, %58 : vector<16x1xf32>
      %cst_46 = arith.constant 1.000000e+00 : f32
      %60 = vector.broadcast %cst_46 : f32 to vector<16x1xf32>
      %61 = arith.cmpf olt, %46, %60 : vector<16x1xf32>
      %62 = arith.extui %61 : vector<16x1xi1> to vector<16x1xi32>
      %63 = arith.sitofp %62 : vector<16x1xi32> to vector<16x1xf32>
      %64 = arith.mulf %59, %63 : vector<16x1xf32>
      %65 = arith.addf %46, %64 : vector<16x1xf32>
      %cst_47 = arith.constant 9.900000e-01 : f32
      %66 = vector.broadcast %cst_47 : f32 to vector<16x1xf32>
      %67 = arith.cmpf oge, %65, %66 : vector<16x1xf32>
      %68 = arith.extui %67 : vector<16x1xi1> to vector<16x1xi32>
      %69 = arith.sitofp %68 : vector<16x1xi32> to vector<16x1xf32>
      %70 = arith.mulf %69, %63 : vector<16x1xf32>
      %cst_48 = arith.constant 9.900000e-01 : f32
      %71 = vector.broadcast %cst_48 : f32 to vector<16x1xf32>
      %72 = arith.cmpf olt, %65, %71 : vector<16x1xf32>
      %73 = arith.extui %72 : vector<16x1xi1> to vector<16x1xi32>
      %74 = arith.sitofp %73 : vector<16x1xi32> to vector<16x1xf32>
      %75 = arith.mulf %74, %63 : vector<16x1xf32>
      %76 = arith.mulf %75, %59 : vector<16x1xf32>
      %77 = arith.addf %46, %76 : vector<16x1xf32>
      %cst_49 = arith.constant 1.000000e+00 : f32
      %78 = vector.broadcast %cst_49 : f32 to vector<16x1xf32>
      %79 = arith.subf %78, %77 : vector<16x1xf32>
      %80 = arith.mulf %70, %79 : vector<16x1xf32>
      %81 = arith.addf %47, %80 : vector<16x1xf32>
      %82 = arith.mulf %70, %81 : vector<16x1xf32>
      %83 = arith.addf %77, %82 : vector<16x1xf32>
      %cst_50 = arith.constant 9.900000e-01 : f32
      %84 = vector.broadcast %cst_50 : f32 to vector<16x1xf32>
      %85 = arith.cmpf olt, %83, %84 : vector<16x1xf32>
      %86 = arith.extui %85 : vector<16x1xi1> to vector<16x1xi32>
      %87 = vector.shape_cast %86 : vector<16x1xi32> to vector<1x16x1xi32>
      %cst_51 = arith.constant dense<0> : vector<1xi32>
      %88 = vector.multi_reduction <add>, %87, %cst_51 [1, 2] : vector<1x16x1xi32> to vector<1xi32>
      %89 = vector.shape_cast %88 : vector<1xi32> to vector<1x1x1xi32>
      %90 = vector.extract %89[0, 0, 0] : i32 from vector<1x1x1xi32>
      %c0_52 = arith.constant 0 : index
      %91 = memref.load %arg14[%c0_52] : memref<1xi32, #tpu.memory_space<smem>>
      memref.store %90, %arg14[%c0_52] : memref<1xi32, #tpu.memory_space<smem>>
      %c0_53 = arith.constant 0 : index
      %c0_54 = arith.constant 0 : index
      %92 = vector.load %arg13[%c0_53, %c0_54] : memref<16x1xf32, #tpu.memory_space<vmem>>, vector<16x1xf32>
      %93 = arith.addf %92, %75 : vector<16x1xf32>
      %94 = arith.addf %93, %70 : vector<16x1xf32>
      %c0_55 = arith.constant 0 : index
      %c0_56 = arith.constant 0 : index
      %95 = vector.load %arg13[%c0_55, %c0_56] : memref<16x1xf32, #tpu.memory_space<vmem>>, vector<16x1xf32>
      tpu.vector_store %arg13[%c0_55, %c0_56], %94 {strides = array<i32>} : memref<16x1xf32, #tpu.memory_space<vmem>>, vector<16x1xf32>,
      %96 = arith.truncf %45 : vector<16x128xf32> to vector<16x128xbf16>
      %c0_57 = arith.constant 0 : index
      %c0_58 = arith.constant 0 : index
      %97 = vector.load %arg2[%c0_57, %c0_58] : memref<128x256xbf16, #tpu.memory_space<vmem>>, vector<128x256xbf16>
      %cst_59 = arith.constant dense<0.000000e+00> : vector<16x256xf32>
      %98 = tpu.matmul %96, %97, %cst_59 {dimension_numbers = #tpu.dot_dimension_numbers<[1], [0], [0], [1], [0, 0, 1, 1], [], []>} : vector<16x128xbf16>, vector<128x256xbf16>, vector<16x256xf32> -> vector<16x256xf32>
      %c0_60 = arith.constant 0 : index
      %c0_61 = arith.constant 0 : index
      %99 = vector.load %arg3[%c0_60, %c0_61] : memref<1x256xf32, #tpu.memory_space<vmem>>, vector<1x256xf32>
      %100 = vector.broadcast %99 : vector<1x256xf32> to vector<16x256xf32>
      %101 = arith.addf %98, %100 : vector<16x256xf32>
      %cst_62 = arith.constant 0.000000e+00 : f32
      %102 = vector.broadcast %cst_62 : f32 to vector<16x256xf32>
      %103 = arith.maximumf %101, %102 : vector<16x256xf32>
      %104 = arith.truncf %103 : vector<16x256xf32> to vector<16x256xbf16>
      %c0_63 = arith.constant 0 : index
      %c0_64 = arith.constant 0 : index
      %105 = vector.load %arg4[%c0_63, %c0_64] : memref<256x128xbf16, #tpu.memory_space<vmem>>, vector<256x128xbf16>
      %cst_65 = arith.constant dense<0.000000e+00> : vector<16x128xf32>
      %106 = tpu.matmul %104, %105, %cst_65 {dimension_numbers = #tpu.dot_dimension_numbers<[1], [0], [0], [1], [0, 0, 1, 1], [], []>} : vector<16x256xbf16>, vector<256x128xbf16>, vector<16x128xf32> -> vector<16x128xf32>
      %c0_66 = arith.constant 0 : index
      %c0_67 = arith.constant 0 : index
      %107 = vector.load %arg5[%c0_66, %c0_67] : memref<1x128xf32, #tpu.memory_space<vmem>>, vector<1x128xf32>
      %108 = vector.broadcast %107 : vector<1x128xf32> to vector<16x128xf32>
      %109 = arith.addf %106, %108 : vector<16x128xf32>
      %110 = arith.mulf %70, %81 : vector<16x1xf32>
      %111 = arith.mulf %75, %59 : vector<16x1xf32>
      %112 = arith.addf %110, %111 : vector<16x1xf32>
      %c0_68 = arith.constant 0 : index
      %c0_69 = arith.constant 0 : index
      %113 = vector.load %arg8[%c0_68, %c0_69] : memref<16x128xf32, #tpu.memory_space<vmem>>, vector<16x128xf32>
      %114 = vector.broadcast %112 : vector<16x1xf32> to vector<16x128xf32>
      %115 = arith.mulf %109, %114 : vector<16x128xf32>
      %116 = arith.addf %113, %115 : vector<16x128xf32>
      %c0_70 = arith.constant 0 : index
      %c0_71 = arith.constant 0 : index
      %117 = vector.load %arg8[%c0_70, %c0_71] : memref<16x128xf32, #tpu.memory_space<vmem>>, vector<16x128xf32>
      tpu.vector_store %arg8[%c0_70, %c0_71], %116 {strides = array<i32>} : memref<16x128xf32, #tpu.memory_space<vmem>>, vector<16x128xf32>,
      %c0_72 = arith.constant 0 : index
      %c0_73 = arith.constant 0 : index
      %118 = vector.load %arg10[%c0_72, %c0_73] : memref<16x128xf32, #tpu.memory_space<vmem>>, vector<16x128xf32>
      tpu.vector_store %arg10[%c0_72, %c0_73], %109 {strides = array<i32>} : memref<16x128xf32, #tpu.memory_space<vmem>>, vector<16x128xf32>,
      %c0_74 = arith.constant 0 : index
      %c0_75 = arith.constant 0 : index
      %119 = vector.load %arg11[%c0_74, %c0_75] : memref<16x1xf32, #tpu.memory_space<vmem>>, vector<16x1xf32>
      tpu.vector_store %arg11[%c0_74, %c0_75], %83 {strides = array<i32>} : memref<16x1xf32, #tpu.memory_space<vmem>>, vector<16x1xf32>,
      %c0_76 = arith.constant 0 : index
      %c0_77 = arith.constant 0 : index
      %120 = vector.load %arg12[%c0_76, %c0_77] : memref<16x1xf32, #tpu.memory_space<vmem>>, vector<16x1xf32>
      tpu.vector_store %arg12[%c0_76, %c0_77], %81 {strides = array<i32>} : memref<16x1xf32, #tpu.memory_space<vmem>>, vector<16x1xf32>,
    } else {
    }
    %c1_i32 = arith.constant 1 : i32
    %c0_23 = arith.constant 0 : index
    %31 = memref.load %arg14[%c0_23] : memref<1xi32, #tpu.memory_space<smem>>
    %c0_i32_24 = arith.constant 0 : i32
    %32 = arith.cmpi sgt, %31, %c0_i32_24 : i32
    %33 = arith.extui %32 : i1 to i32
    %c0_i32_25 = arith.constant 0 : i32
    %34 = arith.cmpi ne, %33, %c0_i32_25 : i32
    scf.if %34 {
      %c0_36 = arith.constant 0 : index
      %c0_37 = arith.constant 0 : index
      %45 = vector.load %arg10[%c0_36, %c0_37] : memref<16x128xf32, #tpu.memory_space<vmem>>, vector<16x128xf32>
      %c0_38 = arith.constant 0 : index
      %c0_39 = arith.constant 0 : index
      %46 = vector.load %arg11[%c0_38, %c0_39] : memref<16x1xf32, #tpu.memory_space<vmem>>, vector<16x1xf32>
      %c0_40 = arith.constant 0 : index
      %c0_41 = arith.constant 0 : index
      %47 = vector.load %arg12[%c0_40, %c0_41] : memref<16x1xf32, #tpu.memory_space<vmem>>, vector<16x1xf32>
      %c0_42 = arith.constant 0 : index
      %c0_43 = arith.constant 0 : index
      %48 = vector.load %arg6[%c0_42, %c0_43] : memref<1x128xf32, #tpu.memory_space<vmem>>, vector<1x128xf32>
      %49 = vector.broadcast %48 : vector<1x128xf32> to vector<16x128xf32>
      %50 = arith.mulf %45, %49 : vector<16x128xf32>
      %cst_44 = arith.constant dense<0.000000e+00> : vector<16xf32>
      %51 = vector.multi_reduction <add>, %50, %cst_44 [1] : vector<16x128xf32> to vector<16xf32>
      %52 = vector.shape_cast %51 : vector<16xf32> to vector<16x1xf32>
      %53 = vector.broadcast %26 : f32 to vector<16x1xf32>
      %54 = arith.addf %52, %53 : vector<16x1xf32>
      %55 = arith.negf %54 : vector<16x1xf32>
      %56 = math.exp %55 : vector<16x1xf32>
      %cst_45 = arith.constant 1.000000e+00 : f32
      %57 = vector.broadcast %cst_45 : f32 to vector<16x1xf32>
      %58 = arith.addf %57, %56 : vector<16x1xf32>
      %59 = arith.divf %57, %58 : vector<16x1xf32>
      %cst_46 = arith.constant 1.000000e+00 : f32
      %60 = vector.broadcast %cst_46 : f32 to vector<16x1xf32>
      %61 = arith.cmpf olt, %46, %60 : vector<16x1xf32>
      %62 = arith.extui %61 : vector<16x1xi1> to vector<16x1xi32>
      %63 = arith.sitofp %62 : vector<16x1xi32> to vector<16x1xf32>
      %64 = arith.mulf %59, %63 : vector<16x1xf32>
      %65 = arith.addf %46, %64 : vector<16x1xf32>
      %cst_47 = arith.constant 9.900000e-01 : f32
      %66 = vector.broadcast %cst_47 : f32 to vector<16x1xf32>
      %67 = arith.cmpf oge, %65, %66 : vector<16x1xf32>
      %68 = arith.extui %67 : vector<16x1xi1> to vector<16x1xi32>
      %69 = arith.sitofp %68 : vector<16x1xi32> to vector<16x1xf32>
      %70 = arith.mulf %69, %63 : vector<16x1xf32>
      %cst_48 = arith.constant 9.900000e-01 : f32
      %71 = vector.broadcast %cst_48 : f32 to vector<16x1xf32>
      %72 = arith.cmpf olt, %65, %71 : vector<16x1xf32>
      %73 = arith.extui %72 : vector<16x1xi1> to vector<16x1xi32>
      %74 = arith.sitofp %73 : vector<16x1xi32> to vector<16x1xf32>
      %75 = arith.mulf %74, %63 : vector<16x1xf32>
      %76 = arith.mulf %75, %59 : vector<16x1xf32>
      %77 = arith.addf %46, %76 : vector<16x1xf32>
      %cst_49 = arith.constant 1.000000e+00 : f32
      %78 = vector.broadcast %cst_49 : f32 to vector<16x1xf32>
      %79 = arith.subf %78, %77 : vector<16x1xf32>
      %80 = arith.mulf %70, %79 : vector<16x1xf32>
      %81 = arith.addf %47, %80 : vector<16x1xf32>
      %82 = arith.mulf %70, %81 : vector<16x1xf32>
      %83 = arith.addf %77, %82 : vector<16x1xf32>
      %cst_50 = arith.constant 9.900000e-01 : f32
      %84 = vector.broadcast %cst_50 : f32 to vector<16x1xf32>
      %85 = arith.cmpf olt, %83, %84 : vector<16x1xf32>
      %86 = arith.extui %85 : vector<16x1xi1> to vector<16x1xi32>
      %87 = vector.shape_cast %86 : vector<16x1xi32> to vector<1x16x1xi32>
      %cst_51 = arith.constant dense<0> : vector<1xi32>
      %88 = vector.multi_reduction <add>, %87, %cst_51 [1, 2] : vector<1x16x1xi32> to vector<1xi32>
      %89 = vector.shape_cast %88 : vector<1xi32> to vector<1x1x1xi32>
      %90 = vector.extract %89[0, 0, 0] : i32 from vector<1x1x1xi32>
      %c0_52 = arith.constant 0 : index
      %91 = memref.load %arg14[%c0_52] : memref<1xi32, #tpu.memory_space<smem>>
      memref.store %90, %arg14[%c0_52] : memref<1xi32, #tpu.memory_space<smem>>
      %c0_53 = arith.constant 0 : index
      %c0_54 = arith.constant 0 : index
      %92 = vector.load %arg13[%c0_53, %c0_54] : memref<16x1xf32, #tpu.memory_space<vmem>>, vector<16x1xf32>
      %93 = arith.addf %92, %75 : vector<16x1xf32>
      %94 = arith.addf %93, %70 : vector<16x1xf32>
      %c0_55 = arith.constant 0 : index
      %c0_56 = arith.constant 0 : index
      %95 = vector.load %arg13[%c0_55, %c0_56] : memref<16x1xf32, #tpu.memory_space<vmem>>, vector<16x1xf32>
      tpu.vector_store %arg13[%c0_55, %c0_56], %94 {strides = array<i32>} : memref<16x1xf32, #tpu.memory_space<vmem>>, vector<16x1xf32>,
      %96 = arith.truncf %45 : vector<16x128xf32> to vector<16x128xbf16>
      %c0_57 = arith.constant 0 : index
      %c0_58 = arith.constant 0 : index
      %97 = vector.load %arg2[%c0_57, %c0_58] : memref<128x256xbf16, #tpu.memory_space<vmem>>, vector<128x256xbf16>
      %cst_59 = arith.constant dense<0.000000e+00> : vector<16x256xf32>
      %98 = tpu.matmul %96, %97, %cst_59 {dimension_numbers = #tpu.dot_dimension_numbers<[1], [0], [0], [1], [0, 0, 1, 1], [], []>} : vector<16x128xbf16>, vector<128x256xbf16>, vector<16x256xf32> -> vector<16x256xf32>
      %c0_60 = arith.constant 0 : index
      %c0_61 = arith.constant 0 : index
      %99 = vector.load %arg3[%c0_60, %c0_61] : memref<1x256xf32, #tpu.memory_space<vmem>>, vector<1x256xf32>
      %100 = vector.broadcast %99 : vector<1x256xf32> to vector<16x256xf32>
      %101 = arith.addf %98, %100 : vector<16x256xf32>
      %cst_62 = arith.constant 0.000000e+00 : f32
      %102 = vector.broadcast %cst_62 : f32 to vector<16x256xf32>
      %103 = arith.maximumf %101, %102 : vector<16x256xf32>
      %104 = arith.truncf %103 : vector<16x256xf32> to vector<16x256xbf16>
      %c0_63 = arith.constant 0 : index
      %c0_64 = arith.constant 0 : index
      %105 = vector.load %arg4[%c0_63, %c0_64] : memref<256x128xbf16, #tpu.memory_space<vmem>>, vector<256x128xbf16>
      %cst_65 = arith.constant dense<0.000000e+00> : vector<16x128xf32>
      %106 = tpu.matmul %104, %105, %cst_65 {dimension_numbers = #tpu.dot_dimension_numbers<[1], [0], [0], [1], [0, 0, 1, 1], [], []>} : vector<16x256xbf16>, vector<256x128xbf16>, vector<16x128xf32> -> vector<16x128xf32>
      %c0_66 = arith.constant 0 : index
      %c0_67 = arith.constant 0 : index
      %107 = vector.load %arg5[%c0_66, %c0_67] : memref<1x128xf32, #tpu.memory_space<vmem>>, vector<1x128xf32>
      %108 = vector.broadcast %107 : vector<1x128xf32> to vector<16x128xf32>
      %109 = arith.addf %106, %108 : vector<16x128xf32>
      %110 = arith.mulf %70, %81 : vector<16x1xf32>
      %111 = arith.mulf %75, %59 : vector<16x1xf32>
      %112 = arith.addf %110, %111 : vector<16x1xf32>
      %c0_68 = arith.constant 0 : index
      %c0_69 = arith.constant 0 : index
      %113 = vector.load %arg8[%c0_68, %c0_69] : memref<16x128xf32, #tpu.memory_space<vmem>>, vector<16x128xf32>
      %114 = vector.broadcast %112 : vector<16x1xf32> to vector<16x128xf32>
      %115 = arith.mulf %109, %114 : vector<16x128xf32>
      %116 = arith.addf %113, %115 : vector<16x128xf32>
      %c0_70 = arith.constant 0 : index
      %c0_71 = arith.constant 0 : index
      %117 = vector.load %arg8[%c0_70, %c0_71] : memref<16x128xf32, #tpu.memory_space<vmem>>, vector<16x128xf32>
      tpu.vector_store %arg8[%c0_70, %c0_71], %116 {strides = array<i32>} : memref<16x128xf32, #tpu.memory_space<vmem>>, vector<16x128xf32>,
      %c0_72 = arith.constant 0 : index
      %c0_73 = arith.constant 0 : index
      %118 = vector.load %arg10[%c0_72, %c0_73] : memref<16x128xf32, #tpu.memory_space<vmem>>, vector<16x128xf32>
      tpu.vector_store %arg10[%c0_72, %c0_73], %109 {strides = array<i32>} : memref<16x128xf32, #tpu.memory_space<vmem>>, vector<16x128xf32>,
      %c0_74 = arith.constant 0 : index
      %c0_75 = arith.constant 0 : index
      %119 = vector.load %arg11[%c0_74, %c0_75] : memref<16x1xf32, #tpu.memory_space<vmem>>, vector<16x1xf32>
      tpu.vector_store %arg11[%c0_74, %c0_75], %83 {strides = array<i32>} : memref<16x1xf32, #tpu.memory_space<vmem>>, vector<16x1xf32>,
      %c0_76 = arith.constant 0 : index
      %c0_77 = arith.constant 0 : index
      %120 = vector.load %arg12[%c0_76, %c0_77] : memref<16x1xf32, #tpu.memory_space<vmem>>, vector<16x1xf32>
      tpu.vector_store %arg12[%c0_76, %c0_77], %81 {strides = array<i32>} : memref<16x1xf32, #tpu.memory_space<vmem>>, vector<16x1xf32>,
    } else {
    }
    %c2_i32 = arith.constant 2 : i32
    %c0_26 = arith.constant 0 : index
    %35 = memref.load %arg14[%c0_26] : memref<1xi32, #tpu.memory_space<smem>>
    %c0_i32_27 = arith.constant 0 : i32
    %36 = arith.cmpi sgt, %35, %c0_i32_27 : i32
    %37 = arith.extui %36 : i1 to i32
    %c0_i32_28 = arith.constant 0 : i32
    %38 = arith.cmpi ne, %37, %c0_i32_28 : i32
    scf.if %38 {
      %c0_36 = arith.constant 0 : index
      %c0_37 = arith.constant 0 : index
      %45 = vector.load %arg10[%c0_36, %c0_37] : memref<16x128xf32, #tpu.memory_space<vmem>>, vector<16x128xf32>
      %c0_38 = arith.constant 0 : index
      %c0_39 = arith.constant 0 : index
      %46 = vector.load %arg11[%c0_38, %c0_39] : memref<16x1xf32, #tpu.memory_space<vmem>>, vector<16x1xf32>
      %c0_40 = arith.constant 0 : index
      %c0_41 = arith.constant 0 : index
      %47 = vector.load %arg12[%c0_40, %c0_41] : memref<16x1xf32, #tpu.memory_space<vmem>>, vector<16x1xf32>
      %c0_42 = arith.constant 0 : index
      %c0_43 = arith.constant 0 : index
      %48 = vector.load %arg6[%c0_42, %c0_43] : memref<1x128xf32, #tpu.memory_space<vmem>>, vector<1x128xf32>
      %49 = vector.broadcast %48 : vector<1x128xf32> to vector<16x128xf32>
      %50 = arith.mulf %45, %49 : vector<16x128xf32>
      %cst_44 = arith.constant dense<0.000000e+00> : vector<16xf32>
      %51 = vector.multi_reduction <add>, %50, %cst_44 [1] : vector<16x128xf32> to vector<16xf32>
      %52 = vector.shape_cast %51 : vector<16xf32> to vector<16x1xf32>
      %53 = vector.broadcast %26 : f32 to vector<16x1xf32>
      %54 = arith.addf %52, %53 : vector<16x1xf32>
      %55 = arith.negf %54 : vector<16x1xf32>
      %56 = math.exp %55 : vector<16x1xf32>
      %cst_45 = arith.constant 1.000000e+00 : f32
      %57 = vector.broadcast %cst_45 : f32 to vector<16x1xf32>
      %58 = arith.addf %57, %56 : vector<16x1xf32>
      %59 = arith.divf %57, %58 : vector<16x1xf32>
      %cst_46 = arith.constant 1.000000e+00 : f32
      %60 = vector.broadcast %cst_46 : f32 to vector<16x1xf32>
      %61 = arith.cmpf olt, %46, %60 : vector<16x1xf32>
      %62 = arith.extui %61 : vector<16x1xi1> to vector<16x1xi32>
      %63 = arith.sitofp %62 : vector<16x1xi32> to vector<16x1xf32>
      %64 = arith.mulf %59, %63 : vector<16x1xf32>
      %65 = arith.addf %46, %64 : vector<16x1xf32>
      %cst_47 = arith.constant 9.900000e-01 : f32
      %66 = vector.broadcast %cst_47 : f32 to vector<16x1xf32>
      %67 = arith.cmpf oge, %65, %66 : vector<16x1xf32>
      %68 = arith.extui %67 : vector<16x1xi1> to vector<16x1xi32>
      %69 = arith.sitofp %68 : vector<16x1xi32> to vector<16x1xf32>
      %70 = arith.mulf %69, %63 : vector<16x1xf32>
      %cst_48 = arith.constant 9.900000e-01 : f32
      %71 = vector.broadcast %cst_48 : f32 to vector<16x1xf32>
      %72 = arith.cmpf olt, %65, %71 : vector<16x1xf32>
      %73 = arith.extui %72 : vector<16x1xi1> to vector<16x1xi32>
      %74 = arith.sitofp %73 : vector<16x1xi32> to vector<16x1xf32>
      %75 = arith.mulf %74, %63 : vector<16x1xf32>
      %76 = arith.mulf %75, %59 : vector<16x1xf32>
      %77 = arith.addf %46, %76 : vector<16x1xf32>
      %cst_49 = arith.constant 1.000000e+00 : f32
      %78 = vector.broadcast %cst_49 : f32 to vector<16x1xf32>
      %79 = arith.subf %78, %77 : vector<16x1xf32>
      %80 = arith.mulf %70, %79 : vector<16x1xf32>
      %81 = arith.addf %47, %80 : vector<16x1xf32>
      %82 = arith.mulf %70, %81 : vector<16x1xf32>
      %83 = arith.addf %77, %82 : vector<16x1xf32>
      %cst_50 = arith.constant 9.900000e-01 : f32
      %84 = vector.broadcast %cst_50 : f32 to vector<16x1xf32>
      %85 = arith.cmpf olt, %83, %84 : vector<16x1xf32>
      %86 = arith.extui %85 : vector<16x1xi1> to vector<16x1xi32>
      %87 = vector.shape_cast %86 : vector<16x1xi32> to vector<1x16x1xi32>
      %cst_51 = arith.constant dense<0> : vector<1xi32>
      %88 = vector.multi_reduction <add>, %87, %cst_51 [1, 2] : vector<1x16x1xi32> to vector<1xi32>
      %89 = vector.shape_cast %88 : vector<1xi32> to vector<1x1x1xi32>
      %90 = vector.extract %89[0, 0, 0] : i32 from vector<1x1x1xi32>
      %c0_52 = arith.constant 0 : index
      %91 = memref.load %arg14[%c0_52] : memref<1xi32, #tpu.memory_space<smem>>
      memref.store %90, %arg14[%c0_52] : memref<1xi32, #tpu.memory_space<smem>>
      %c0_53 = arith.constant 0 : index
      %c0_54 = arith.constant 0 : index
      %92 = vector.load %arg13[%c0_53, %c0_54] : memref<16x1xf32, #tpu.memory_space<vmem>>, vector<16x1xf32>
      %93 = arith.addf %92, %75 : vector<16x1xf32>
      %94 = arith.addf %93, %70 : vector<16x1xf32>
      %c0_55 = arith.constant 0 : index
      %c0_56 = arith.constant 0 : index
      %95 = vector.load %arg13[%c0_55, %c0_56] : memref<16x1xf32, #tpu.memory_space<vmem>>, vector<16x1xf32>
      tpu.vector_store %arg13[%c0_55, %c0_56], %94 {strides = array<i32>} : memref<16x1xf32, #tpu.memory_space<vmem>>, vector<16x1xf32>,
      %96 = arith.truncf %45 : vector<16x128xf32> to vector<16x128xbf16>
      %c0_57 = arith.constant 0 : index
      %c0_58 = arith.constant 0 : index
      %97 = vector.load %arg2[%c0_57, %c0_58] : memref<128x256xbf16, #tpu.memory_space<vmem>>, vector<128x256xbf16>
      %cst_59 = arith.constant dense<0.000000e+00> : vector<16x256xf32>
      %98 = tpu.matmul %96, %97, %cst_59 {dimension_numbers = #tpu.dot_dimension_numbers<[1], [0], [0], [1], [0, 0, 1, 1], [], []>} : vector<16x128xbf16>, vector<128x256xbf16>, vector<16x256xf32> -> vector<16x256xf32>
      %c0_60 = arith.constant 0 : index
      %c0_61 = arith.constant 0 : index
      %99 = vector.load %arg3[%c0_60, %c0_61] : memref<1x256xf32, #tpu.memory_space<vmem>>, vector<1x256xf32>
      %100 = vector.broadcast %99 : vector<1x256xf32> to vector<16x256xf32>
      %101 = arith.addf %98, %100 : vector<16x256xf32>
      %cst_62 = arith.constant 0.000000e+00 : f32
      %102 = vector.broadcast %cst_62 : f32 to vector<16x256xf32>
      %103 = arith.maximumf %101, %102 : vector<16x256xf32>
      %104 = arith.truncf %103 : vector<16x256xf32> to vector<16x256xbf16>
      %c0_63 = arith.constant 0 : index
      %c0_64 = arith.constant 0 : index
      %105 = vector.load %arg4[%c0_63, %c0_64] : memref<256x128xbf16, #tpu.memory_space<vmem>>, vector<256x128xbf16>
      %cst_65 = arith.constant dense<0.000000e+00> : vector<16x128xf32>
      %106 = tpu.matmul %104, %105, %cst_65 {dimension_numbers = #tpu.dot_dimension_numbers<[1], [0], [0], [1], [0, 0, 1, 1], [], []>} : vector<16x256xbf16>, vector<256x128xbf16>, vector<16x128xf32> -> vector<16x128xf32>
      %c0_66 = arith.constant 0 : index
      %c0_67 = arith.constant 0 : index
      %107 = vector.load %arg5[%c0_66, %c0_67] : memref<1x128xf32, #tpu.memory_space<vmem>>, vector<1x128xf32>
      %108 = vector.broadcast %107 : vector<1x128xf32> to vector<16x128xf32>
      %109 = arith.addf %106, %108 : vector<16x128xf32>
      %110 = arith.mulf %70, %81 : vector<16x1xf32>
      %111 = arith.mulf %75, %59 : vector<16x1xf32>
      %112 = arith.addf %110, %111 : vector<16x1xf32>
      %c0_68 = arith.constant 0 : index
      %c0_69 = arith.constant 0 : index
      %113 = vector.load %arg8[%c0_68, %c0_69] : memref<16x128xf32, #tpu.memory_space<vmem>>, vector<16x128xf32>
      %114 = vector.broadcast %112 : vector<16x1xf32> to vector<16x128xf32>
      %115 = arith.mulf %109, %114 : vector<16x128xf32>
      %116 = arith.addf %113, %115 : vector<16x128xf32>
      %c0_70 = arith.constant 0 : index
      %c0_71 = arith.constant 0 : index
      %117 = vector.load %arg8[%c0_70, %c0_71] : memref<16x128xf32, #tpu.memory_space<vmem>>, vector<16x128xf32>
      tpu.vector_store %arg8[%c0_70, %c0_71], %116 {strides = array<i32>} : memref<16x128xf32, #tpu.memory_space<vmem>>, vector<16x128xf32>,
      %c0_72 = arith.constant 0 : index
      %c0_73 = arith.constant 0 : index
      %118 = vector.load %arg10[%c0_72, %c0_73] : memref<16x128xf32, #tpu.memory_space<vmem>>, vector<16x128xf32>
      tpu.vector_store %arg10[%c0_72, %c0_73], %109 {strides = array<i32>} : memref<16x128xf32, #tpu.memory_space<vmem>>, vector<16x128xf32>,
      %c0_74 = arith.constant 0 : index
      %c0_75 = arith.constant 0 : index
      %119 = vector.load %arg11[%c0_74, %c0_75] : memref<16x1xf32, #tpu.memory_space<vmem>>, vector<16x1xf32>
      tpu.vector_store %arg11[%c0_74, %c0_75], %83 {strides = array<i32>} : memref<16x1xf32, #tpu.memory_space<vmem>>, vector<16x1xf32>,
      %c0_76 = arith.constant 0 : index
      %c0_77 = arith.constant 0 : index
      %120 = vector.load %arg12[%c0_76, %c0_77] : memref<16x1xf32, #tpu.memory_space<vmem>>, vector<16x1xf32>
      tpu.vector_store %arg12[%c0_76, %c0_77], %81 {strides = array<i32>} : memref<16x1xf32, #tpu.memory_space<vmem>>, vector<16x1xf32>,
    } else {
    }
    %c3_i32 = arith.constant 3 : i32
    %c0_29 = arith.constant 0 : index
    %39 = memref.load %arg14[%c0_29] : memref<1xi32, #tpu.memory_space<smem>>
    %c0_i32_30 = arith.constant 0 : i32
    %40 = arith.cmpi sgt, %39, %c0_i32_30 : i32
    %41 = arith.extui %40 : i1 to i32
    %c0_i32_31 = arith.constant 0 : i32
    %42 = arith.cmpi ne, %41, %c0_i32_31 : i32
    scf.if %42 {
      %c0_36 = arith.constant 0 : index
      %c0_37 = arith.constant 0 : index
      %45 = vector.load %arg10[%c0_36, %c0_37] : memref<16x128xf32, #tpu.memory_space<vmem>>, vector<16x128xf32>
      %c0_38 = arith.constant 0 : index
      %c0_39 = arith.constant 0 : index
      %46 = vector.load %arg11[%c0_38, %c0_39] : memref<16x1xf32, #tpu.memory_space<vmem>>, vector<16x1xf32>
      %c0_40 = arith.constant 0 : index
      %c0_41 = arith.constant 0 : index
      %47 = vector.load %arg12[%c0_40, %c0_41] : memref<16x1xf32, #tpu.memory_space<vmem>>, vector<16x1xf32>
      %c0_42 = arith.constant 0 : index
      %c0_43 = arith.constant 0 : index
      %48 = vector.load %arg6[%c0_42, %c0_43] : memref<1x128xf32, #tpu.memory_space<vmem>>, vector<1x128xf32>
      %49 = vector.broadcast %48 : vector<1x128xf32> to vector<16x128xf32>
      %50 = arith.mulf %45, %49 : vector<16x128xf32>
      %cst_44 = arith.constant dense<0.000000e+00> : vector<16xf32>
      %51 = vector.multi_reduction <add>, %50, %cst_44 [1] : vector<16x128xf32> to vector<16xf32>
      %52 = vector.shape_cast %51 : vector<16xf32> to vector<16x1xf32>
      %53 = vector.broadcast %26 : f32 to vector<16x1xf32>
      %54 = arith.addf %52, %53 : vector<16x1xf32>
      %55 = arith.negf %54 : vector<16x1xf32>
      %56 = math.exp %55 : vector<16x1xf32>
      %cst_45 = arith.constant 1.000000e+00 : f32
      %57 = vector.broadcast %cst_45 : f32 to vector<16x1xf32>
      %58 = arith.addf %57, %56 : vector<16x1xf32>
      %59 = arith.divf %57, %58 : vector<16x1xf32>
      %cst_46 = arith.constant 1.000000e+00 : f32
      %60 = vector.broadcast %cst_46 : f32 to vector<16x1xf32>
      %61 = arith.cmpf olt, %46, %60 : vector<16x1xf32>
      %62 = arith.extui %61 : vector<16x1xi1> to vector<16x1xi32>
      %63 = arith.sitofp %62 : vector<16x1xi32> to vector<16x1xf32>
      %64 = arith.mulf %59, %63 : vector<16x1xf32>
      %65 = arith.addf %46, %64 : vector<16x1xf32>
      %cst_47 = arith.constant 9.900000e-01 : f32
      %66 = vector.broadcast %cst_47 : f32 to vector<16x1xf32>
      %67 = arith.cmpf oge, %65, %66 : vector<16x1xf32>
      %68 = arith.extui %67 : vector<16x1xi1> to vector<16x1xi32>
      %69 = arith.sitofp %68 : vector<16x1xi32> to vector<16x1xf32>
      %70 = arith.mulf %69, %63 : vector<16x1xf32>
      %cst_48 = arith.constant 9.900000e-01 : f32
      %71 = vector.broadcast %cst_48 : f32 to vector<16x1xf32>
      %72 = arith.cmpf olt, %65, %71 : vector<16x1xf32>
      %73 = arith.extui %72 : vector<16x1xi1> to vector<16x1xi32>
      %74 = arith.sitofp %73 : vector<16x1xi32> to vector<16x1xf32>
      %75 = arith.mulf %74, %63 : vector<16x1xf32>
      %76 = arith.mulf %75, %59 : vector<16x1xf32>
      %77 = arith.addf %46, %76 : vector<16x1xf32>
      %cst_49 = arith.constant 1.000000e+00 : f32
      %78 = vector.broadcast %cst_49 : f32 to vector<16x1xf32>
      %79 = arith.subf %78, %77 : vector<16x1xf32>
      %80 = arith.mulf %70, %79 : vector<16x1xf32>
      %81 = arith.addf %47, %80 : vector<16x1xf32>
      %82 = arith.mulf %70, %81 : vector<16x1xf32>
      %83 = arith.addf %77, %82 : vector<16x1xf32>
      %cst_50 = arith.constant 9.900000e-01 : f32
      %84 = vector.broadcast %cst_50 : f32 to vector<16x1xf32>
      %85 = arith.cmpf olt, %83, %84 : vector<16x1xf32>
      %86 = arith.extui %85 : vector<16x1xi1> to vector<16x1xi32>
      %87 = vector.shape_cast %86 : vector<16x1xi32> to vector<1x16x1xi32>
      %cst_51 = arith.constant dense<0> : vector<1xi32>
      %88 = vector.multi_reduction <add>, %87, %cst_51 [1, 2] : vector<1x16x1xi32> to vector<1xi32>
      %89 = vector.shape_cast %88 : vector<1xi32> to vector<1x1x1xi32>
      %90 = vector.extract %89[0, 0, 0] : i32 from vector<1x1x1xi32>
      %c0_52 = arith.constant 0 : index
      %91 = memref.load %arg14[%c0_52] : memref<1xi32, #tpu.memory_space<smem>>
      memref.store %90, %arg14[%c0_52] : memref<1xi32, #tpu.memory_space<smem>>
      %c0_53 = arith.constant 0 : index
      %c0_54 = arith.constant 0 : index
      %92 = vector.load %arg13[%c0_53, %c0_54] : memref<16x1xf32, #tpu.memory_space<vmem>>, vector<16x1xf32>
      %93 = arith.addf %92, %75 : vector<16x1xf32>
      %94 = arith.addf %93, %70 : vector<16x1xf32>
      %c0_55 = arith.constant 0 : index
      %c0_56 = arith.constant 0 : index
      %95 = vector.load %arg13[%c0_55, %c0_56] : memref<16x1xf32, #tpu.memory_space<vmem>>, vector<16x1xf32>
      tpu.vector_store %arg13[%c0_55, %c0_56], %94 {strides = array<i32>} : memref<16x1xf32, #tpu.memory_space<vmem>>, vector<16x1xf32>,
      %96 = arith.truncf %45 : vector<16x128xf32> to vector<16x128xbf16>
      %c0_57 = arith.constant 0 : index
      %c0_58 = arith.constant 0 : index
      %97 = vector.load %arg2[%c0_57, %c0_58] : memref<128x256xbf16, #tpu.memory_space<vmem>>, vector<128x256xbf16>
      %cst_59 = arith.constant dense<0.000000e+00> : vector<16x256xf32>
      %98 = tpu.matmul %96, %97, %cst_59 {dimension_numbers = #tpu.dot_dimension_numbers<[1], [0], [0], [1], [0, 0, 1, 1], [], []>} : vector<16x128xbf16>, vector<128x256xbf16>, vector<16x256xf32> -> vector<16x256xf32>
      %c0_60 = arith.constant 0 : index
      %c0_61 = arith.constant 0 : index
      %99 = vector.load %arg3[%c0_60, %c0_61] : memref<1x256xf32, #tpu.memory_space<vmem>>, vector<1x256xf32>
      %100 = vector.broadcast %99 : vector<1x256xf32> to vector<16x256xf32>
      %101 = arith.addf %98, %100 : vector<16x256xf32>
      %cst_62 = arith.constant 0.000000e+00 : f32
      %102 = vector.broadcast %cst_62 : f32 to vector<16x256xf32>
      %103 = arith.maximumf %101, %102 : vector<16x256xf32>
      %104 = arith.truncf %103 : vector<16x256xf32> to vector<16x256xbf16>
      %c0_63 = arith.constant 0 : index
      %c0_64 = arith.constant 0 : index
      %105 = vector.load %arg4[%c0_63, %c0_64] : memref<256x128xbf16, #tpu.memory_space<vmem>>, vector<256x128xbf16>
      %cst_65 = arith.constant dense<0.000000e+00> : vector<16x128xf32>
      %106 = tpu.matmul %104, %105, %cst_65 {dimension_numbers = #tpu.dot_dimension_numbers<[1], [0], [0], [1], [0, 0, 1, 1], [], []>} : vector<16x256xbf16>, vector<256x128xbf16>, vector<16x128xf32> -> vector<16x128xf32>
      %c0_66 = arith.constant 0 : index
      %c0_67 = arith.constant 0 : index
      %107 = vector.load %arg5[%c0_66, %c0_67] : memref<1x128xf32, #tpu.memory_space<vmem>>, vector<1x128xf32>
      %108 = vector.broadcast %107 : vector<1x128xf32> to vector<16x128xf32>
      %109 = arith.addf %106, %108 : vector<16x128xf32>
      %110 = arith.mulf %70, %81 : vector<16x1xf32>
      %111 = arith.mulf %75, %59 : vector<16x1xf32>
      %112 = arith.addf %110, %111 : vector<16x1xf32>
      %c0_68 = arith.constant 0 : index
      %c0_69 = arith.constant 0 : index
      %113 = vector.load %arg8[%c0_68, %c0_69] : memref<16x128xf32, #tpu.memory_space<vmem>>, vector<16x128xf32>
      %114 = vector.broadcast %112 : vector<16x1xf32> to vector<16x128xf32>
      %115 = arith.mulf %109, %114 : vector<16x128xf32>
      %116 = arith.addf %113, %115 : vector<16x128xf32>
      %c0_70 = arith.constant 0 : index
      %c0_71 = arith.constant 0 : index
      %117 = vector.load %arg8[%c0_70, %c0_71] : memref<16x128xf32, #tpu.memory_space<vmem>>, vector<16x128xf32>
      tpu.vector_store %arg8[%c0_70, %c0_71], %116 {strides = array<i32>} : memref<16x128xf32, #tpu.memory_space<vmem>>, vector<16x128xf32>,
      %c0_72 = arith.constant 0 : index
      %c0_73 = arith.constant 0 : index
      %118 = vector.load %arg10[%c0_72, %c0_73] : memref<16x128xf32, #tpu.memory_space<vmem>>, vector<16x128xf32>
      tpu.vector_store %arg10[%c0_72, %c0_73], %109 {strides = array<i32>} : memref<16x128xf32, #tpu.memory_space<vmem>>, vector<16x128xf32>,
      %c0_74 = arith.constant 0 : index
      %c0_75 = arith.constant 0 : index
      %119 = vector.load %arg11[%c0_74, %c0_75] : memref<16x1xf32, #tpu.memory_space<vmem>>, vector<16x1xf32>
      tpu.vector_store %arg11[%c0_74, %c0_75], %83 {strides = array<i32>} : memref<16x1xf32, #tpu.memory_space<vmem>>, vector<16x1xf32>,
      %c0_76 = arith.constant 0 : index
      %c0_77 = arith.constant 0 : index
      %120 = vector.load %arg12[%c0_76, %c0_77] : memref<16x1xf32, #tpu.memory_space<vmem>>, vector<16x1xf32>
      tpu.vector_store %arg12[%c0_76, %c0_77], %81 {strides = array<i32>} : memref<16x1xf32, #tpu.memory_space<vmem>>, vector<16x1xf32>,
    } else {
    }
    %c0_32 = arith.constant 0 : index
    %c0_33 = arith.constant 0 : index
    %43 = vector.load %arg13[%c0_32, %c0_33] : memref<16x1xf32, #tpu.memory_space<vmem>>, vector<16x1xf32>
    %c0_34 = arith.constant 0 : index
    %c0_35 = arith.constant 0 : index
    %44 = vector.load %arg9[%c0_34, %c0_35] : memref<16x1xf32, #tpu.memory_space<vmem>>, vector<16x1xf32>
    tpu.vector_store %arg9[%c0_34, %c0_35], %43 {strides = array<i32>} : memref<16x1xf32, #tpu.memory_space<vmem>>, vector<16x1xf32>,
    return
  }
  func.func @transform_0(%arg0: i32) -> (i32, i32) {
    %c0_i32 = arith.constant 0 : i32
    %c0_i32_0 = arith.constant 0 : i32
    return %arg0, %c0_i32 : i32, i32
  }
  func.func @transform_1(%arg0: i32) -> (i32, i32) {
    %c0_i32 = arith.constant 0 : i32
    %c0_i32_0 = arith.constant 0 : i32
    %c0_i32_1 = arith.constant 0 : i32
    return %c0_i32, %c0_i32_0 : i32, i32
  }
  func.func @transform_2(%arg0: i32) -> (i32, i32) {
    %c0_i32 = arith.constant 0 : i32
    %c0_i32_0 = arith.constant 0 : i32
    %c0_i32_1 = arith.constant 0 : i32
    return %c0_i32, %c0_i32_0 : i32, i32
  }
  func.func @transform_3(%arg0: i32) -> (i32, i32) {
    %c0_i32 = arith.constant 0 : i32
    %c0_i32_0 = arith.constant 0 : i32
    %c0_i32_1 = arith.constant 0 : i32
    return %c0_i32, %c0_i32_0 : i32, i32
  }
  func.func @transform_4(%arg0: i32) -> (i32, i32) {
    %c0_i32 = arith.constant 0 : i32
    %c0_i32_0 = arith.constant 0 : i32
    %c0_i32_1 = arith.constant 0 : i32
    return %c0_i32, %c0_i32_0 : i32, i32
  }
  func.func @transform_5(%arg0: i32) -> (i32, i32) {
    %c0_i32 = arith.constant 0 : i32
    %c0_i32_0 = arith.constant 0 : i32
    %c0_i32_1 = arith.constant 0 : i32
    return %c0_i32, %c0_i32_0 : i32, i32
  }
  func.func @transform_6(%arg0: i32) -> i32 {
    %c0_i32 = arith.constant 0 : i32
    %c0_i32_0 = arith.constant 0 : i32
    return %c0_i32 : i32
  }
  func.func @transform_7(%arg0: i32) -> (i32, i32) {
    %c0_i32 = arith.constant 0 : i32
    %c0_i32_0 = arith.constant 0 : i32
    return %arg0, %c0_i32 : i32, i32
  }
  func.func @transform_8(%arg0: i32) -> (i32, i32) {
    %c0_i32 = arith.constant 0 : i32
    %c0_i32_0 = arith.constant 0 : i32
    return %arg0, %c0_i32 : i32, i32
  }
}

</mosaic_0001>

<llo_original>
// kernel: squeeze.1
$region0: #{squeeze.1}
  %s0 = inlined_call_operand.vmem [shape: f32[16], index: 0, kind: input, shape index: {}]
  %s1 = inlined_call_operand.hbm [shape: f32[2,8], index: 1, kind: output, shape index: {}]
  $region1: #{squeeze.1} parent=0
    #allocation0 [shape = 'u8[1024]{0}', space=vmem, size = 0x400, scoped, tag = 'operand span for operand 1']
    #allocation1 [shape = 's32[1]{0}', space=sflag, size = 0x4, scoped, tag = 'scoped memory for squeeze.1']
    #allocation2 [shape = 'u8[4096]{0}', space=vmem, size = 0x1000, scoped, tag = 'scoped mem for output reshape']
    #allocation3 [shape = 'u8[4096]{0}', space=vmem, size = 0x1000, scoped, tag = 'scoped mem for input reshape']
    %2 = vsyncpa [#allocation1], 0
    %s4 = sshll.u32 1, 1
    %s5 = ssub.s32 %s4, 1
    %v6 = vld [vmem:[%s0] sm:%s5]
    %7 = vst [vmem:[#allocation3] sm:%s5] %v6
    %v8 = vld [vmem:[#allocation3] sm:$0x1]
    %vm9 = vcmask 64512
    %10 = vst.msk [vmem:[#allocation2] sm:$0x1] %vm9, %v8
    %v11 = vld [vmem:[#allocation3] sm:$0x1]
    %12 = vrot.lane.b32.xlu0 %v11, 120
    %v13 = vpop.permute.xlu0 %12
    %vm14 = vcmask 64512
    %s15 = scalar_lea.vmem [#allocation2], 1
    %16 = vst.msk [vmem:[%s15] sm:$0x1] %vm14, %v13
    %s18 = sshll.u32 1, 2
    %s19 = ssub.s32 %s18, 1
    %v21 = vld [vmem:[#allocation2] sm:%s19]
    %s22 = sshll.u32 1, 2
    %s23 = ssub.s32 %s22, 1
    %24 = vst [vmem:[#allocation0] sm:%s23] %v21
    %s26 = ssub.s32 32, 32
    %27 = vsyncadd [#allocation1], %s26
    %s29 = sshll.u32 [#allocation0], 4
    %s30 = int_to_ptr.vmem [resolvable:$true] %s29
    %32 = dma.vmem_to_hbm [thread:$0]  %s30, 32, %s1, [#allocation1]
    %33 = dma.done [#allocation1], 32
    %34 = vsyncpa [#allocation1], 1

// kernel: encoder_forward.1
$region0: #{encoder_forward.1}
  #allocation0 [shape = 'u32[]', space=smem, size = 0x4, offset = 0x4, fixed_abs, tag = 'smem constant byte address 0x4 - core index']
  #allocation1 [shape = 'u32[144,128]{1,0:T(1,128)}', space=vmem, size = 0x12000, scoped, tag = 'internal scratch']
  #allocation2 [shape = 'f32[16,128]{1,0:T(8,128)}', space=vmem, size = 0x2000, scoped, tag = 'scratch operand']
  #allocation3 [shape = 'f32[16,1]{1,0:T(8,128)}', space=vmem, size = 0x2000, scoped, tag = 'scratch operand']
  #allocation4 [shape = 'f32[16,1]{1,0:T(8,128)}', space=vmem, size = 0x2000, scoped, tag = 'scratch operand']
  #allocation5 [shape = 'f32[16,1]{1,0:T(8,128)}', space=vmem, size = 0x2000, scoped, tag = 'scratch operand']
  #allocation6 [shape = 's32[1]{0:T(128)}', space=smem, size = 0x200, scoped, tag = 'scratch operand']
  #allocation7 [shape = 'f32[1]{0:T(128)S(6)}', space=smem, size = 0x200, scoped, tag = 'scoped memory for encoder_forward.1']
  %s0 = inlined_call_operand.vmem [shape: f32[16,128], index: 0, kind: input, shape index: {}]
  %s1 = inlined_call_operand.vmem [shape: bf16[128,256], index: 1, kind: input, shape index: {}]
  %s2 = inlined_call_operand.vmem [shape: f32[1,256], index: 2, kind: input, shape index: {}]
  %s3 = inlined_call_operand.vmem [shape: bf16[256,128], index: 3, kind: input, shape index: {}]
  %s4 = inlined_call_operand.vmem [shape: f32[1,128], index: 4, kind: input, shape index: {}]
  %s5 = inlined_call_operand.vmem [shape: f32[1,128], index: 5, kind: input, shape index: {}]
  %s6 = inlined_call_operand.<no memory space> [shape: f32[1], index: 6, kind: input, shape index: {}]
  %s7 = inlined_call_operand.hbm [shape: f32[16,128], index: 7, kind: output, shape index: {0}]
  %s8 = inlined_call_operand.vmem [shape: f32[16,1], index: 8, kind: output, shape index: {1}]
  %9 = xla_tuple %s7, %s8
  %s10 = sld [smem:[#allocation0]]
  $region62: #{encoder_forward.1} parent=0
    _
  %s12 = ssub.s32 1, %s10
  %s13 = scalar_select 0, %s12, %s10
  %14 = sst [smem:[#allocation7]] %s6
  $region1: #{encoder_forward.1} parent=0
    #allocation8 [shape = 'u8[8192]{0}', space=vmem, size = 0x2000, scoped, tag = 'output window, operand 0, single buffered']
    #allocation9 [shape = 's32[1]{0}', space=sflag, size = 0x4, scoped, tag = 'scoped memory for encoder_forward.1']
    %15 = vsyncpa [#allocation9], 0
    // Predicated region
    $region2: #{encoder_forward.1} parent=1 // pred_check
      _
    $region3: #{encoder_forward.1} parent=1 // pred_check_branch
      %17 = sbr.rel (0) target = $region5
    $region4: #{encoder_forward.1} parent=1 // pred_region
      _
    $region5: #{encoder_forward.1} parent=1 // pred_fallthru
      _
    // Predicated region
    $region6: #{encoder_forward.1} parent=1 // pred_check
      _
    $region7: #{encoder_forward.1} parent=1 // pred_check_branch
      %19 = sbr.rel (0) target = $region9
    $region8: #{encoder_forward.1} parent=1 // pred_region
      _
    $region9: #{encoder_forward.1} parent=1 // pred_fallthru
      _
    // Predicated region
    $region10: #{encoder_forward.1} parent=1 // pred_check
      _
    $region11: #{encoder_forward.1} parent=1 // pred_check_branch
      %21 = sbr.rel (0) target = $region13
    $region12: #{encoder_forward.1} parent=1 // pred_region
      _
    $region13: #{encoder_forward.1} parent=1 // pred_fallthru
      _
    // Predicated region
    $region14: #{encoder_forward.1} parent=1 // pred_check
      _
    $region15: #{encoder_forward.1} parent=1 // pred_check_branch
      %23 = sbr.rel (0) target = $region17
    $region16: #{encoder_forward.1} parent=1 // pred_region
      _
    $region17: #{encoder_forward.1} parent=1 // pred_fallthru
      _
    // Predicated region
    $region18: #{encoder_forward.1} parent=1 // pred_check
      _
    $region19: #{encoder_forward.1} parent=1 // pred_check_branch
      %25 = sbr.rel (0) target = $region21
    $region20: #{encoder_forward.1} parent=1 // pred_region
      _
    $region21: #{encoder_forward.1} parent=1 // pred_fallthru
      _
    // Predicated region
    $region22: #{encoder_forward.1} parent=1 // pred_check
      _
    $region23: #{encoder_forward.1} parent=1 // pred_check_branch
      %27 = sbr.rel (0) target = $region25
    $region24: #{encoder_forward.1} parent=1 // pred_region
      _
    $region25: #{encoder_forward.1} parent=1 // pred_fallthru
      _
    // Predicated region
    $region26: #{encoder_forward.1} parent=1 // pred_check
      _
    $region27: #{encoder_forward.1} parent=1 // pred_check_branch
      %29 = sbr.rel (0) target = $region29
    $region28: #{encoder_forward.1} parent=1 // pred_region
      _
    $region29: #{encoder_forward.1} parent=1 // pred_fallthru
      _
    %v31 = vld [vmem:[%s0] sm:$0xff]
    %v32 = vld [vmem:[%s0 + $0x8] sm:$0xff]
    %33 = vst [vmem:[#allocation2] sm:$0xff] %v31
    %34 = vst [vmem:[#allocation2 + $0x8] sm:$0xff] %v32
    %35 = vst [vmem:[#allocation8] sm:$0xff] 0.0
    %36 = vst [vmem:[#allocation8 + $0x8] sm:$0xff] 0.0
    %vm37 = vcmask 7168
    %38 = vst.msk [vmem:[#allocation4] sm:$0xff] %vm37, 0.0
    %39 = vst.msk [vmem:[#allocation4 + $0x8] sm:$0xff] %vm37, 0.0
    %40 = vst.msk [vmem:[#allocation5] sm:$0xff] %vm37, 0.0
    %41 = vst.msk [vmem:[#allocation5 + $0x8] sm:$0xff] %vm37, 0.0
    %v42 = vlaneseq
    %v43 = vshrl.u32 %v42, 7
    %v44 = vadd.s32 %v43, 8
    %s45 = smul.u32 0, 16
    %v46 = vstv %s45
    %v47 = vadd.s32 %v43, %v46
    %v48 = vadd.s32 %v44, %v46
    %vm49 = vcmp.lt.s32.totalorder %v47, 16
    %vm50 = vcmp.lt.s32.totalorder %v48, 16
    %v51 = vsel %vm49, 0.0, 2.0
    %v52 = vsel %vm50, 0.0, 2.0
    %53 = vst.msk [vmem:[#allocation3] sm:$0xff] %vm37, %v51
    %54 = vst.msk [vmem:[#allocation3 + $0x8] sm:$0xff] %vm37, %v52
    %vm55 = vcmp.lt.f32.partialorder %v51, 0.99
    %vm56 = vcmp.lt.f32.partialorder %v52, 0.99
    %v57 = vsel %vm55, 1, 0
    %v58 = vsel %vm56, 1, 0
    %v59 = vadd.s32 %v57, %v58
    %v60 = vrot.slane %v59, 4
    %v61 = vadd.s32 %v59, %v60
    %v62 = vrot.slane %v61, 2
    %v63 = vadd.s32 %v61, %v62
    %v64 = vrot.slane %v63, 1
    %v65 = vadd.s32 %v63, %v64
    %s66 = vtos %v65
    %s67 = scalar_lea.smem [#allocation6], 0
    %68 = sst [smem:[%s67]] %s66
    %s69 = sld [smem:[#allocation7]]
    %s70 = sld [smem:[#allocation6]]
    %p71 = scmp.gt.s32.totalorder %s70, 0
    // Predicated region
    $region30: #{encoder_forward.1} parent=1 // pred_check
      %p72 = pneg %p71
    $region31: #{encoder_forward.1} parent=1 // pred_check_branch
      %74 = sbr.rel (%p72) target = $region33
    $region32: #{encoder_forward.1} parent=1 // pred_region
      %v75 = vld [vmem:[#allocation2] sm:$0xff]
      %v76 = vld [vmem:[#allocation2 + $0x8] sm:$0xff]
      %v77 = vld [vmem:[#allocation3] sm:$0xff]
      %v78 = vld [vmem:[#allocation3 + $0x8] sm:$0xff]
      %v79 = vld [vmem:[#allocation4] sm:$0xff]
      %v80 = vld [vmem:[#allocation4 + $0x8] sm:$0xff]
      %v81 = vld [vmem:[%s5] sm:$0x1]
      %v83 = vlaneseq
      %v84 = vshrl.u32 %v83, 7
      %v85 = vsub.s32 0, %v84
      %v86 = vrot.slane %v81, %v85
      %v88 = vmul.f32 %v75, %v86
      %v89 = vmul.f32 %v76, %v86
      %90 = vadd.xlane.f32.xlu0 %v88
      %v91 = vpop.xlane.xlu0 %90
      %92 = vadd.xlane.f32.xlu0 %v89
      %v93 = vpop.xlane.xlu0 %92
      %v94 = vstv %s69
      %v95 = vadd.f32 %v91, %v94
      %v96 = vadd.f32 %v93, %v94
      %v97 = vxor.u32 %v95, 2147483648
      %v98 = vxor.u32 %v96, 2147483648
      %v99 = vmul.f32 %v97, 1.442695
      %v100 = vpow.pop %v99
      %v101 = vmul.f32 %v98, 1.442695
      %v102 = vpow.pop %v101
      %v103 = vadd.f32 %v100, 1.0
      %v104 = vadd.f32 %v102, 1.0
      %v105 = vrcp.pop %v103
      %v106 = vmul.f32 1.0, %v105
      %v107 = vrcp.pop %v104
      %v108 = vmul.f32 1.0, %v107
      %vm109 = vcmp.lt.f32.partialorder %v77, 1.0
      %vm110 = vcmp.lt.f32.partialorder %v78, 1.0
      %v111 = vsel %vm109, 1, 0
      %v112 = vsel %vm110, 1, 0
      %v113 = vcvt.s32.f32 %v111
      %v114 = vcvt.s32.f32 %v112
      %v115 = vmul.f32 %v106, %v113
      %v116 = vmul.f32 %v108, %v114
      %v117 = vadd.f32 %v77, %v115
      %v118 = vadd.f32 %v78, %v116
      %vm119 = vcmp.ge.f32.partialorder %v117, 0.99
      %vm120 = vcmp.ge.f32.partialorder %v118, 0.99
      %v121 = vsel %vm119, 1, 0
      %v122 = vsel %vm120, 1, 0
      %v123 = vcvt.s32.f32 %v121
      %v124 = vcvt.s32.f32 %v122
      %v125 = vmul.f32 %v123, %v113
      %v126 = vmul.f32 %v124, %v114
      %vm127 = vcmp.lt.f32.partialorder %v117, 0.99
      %vm128 = vcmp.lt.f32.partialorder %v118, 0.99
      %v129 = vsel %vm127, 1, 0
      %v130 = vsel %vm128, 1, 0
      %v131 = vcvt.s32.f32 %v129
      %v132 = vcvt.s32.f32 %v130
      %v133 = vmul.f32 %v131, %v113
      %v134 = vmul.f32 %v132, %v114
      %v135 = vmul.f32 %v133, %v106
      %v136 = vmul.f32 %v134, %v108
      %v137 = vadd.f32 %v77, %v135
      %v138 = vadd.f32 %v78, %v136
      %v139 = vsub.f32 1.0, %v137
      %v140 = vsub.f32 1.0, %v138
      %v141 = vmul.f32 %v125, %v139
      %v142 = vmul.f32 %v126, %v140
      %v143 = vadd.f32 %v79, %v141
      %v144 = vadd.f32 %v80, %v142
      %v145 = vmul.f32 %v125, %v143
      %v146 = vmul.f32 %v126, %v144
      %v147 = vadd.f32 %v137, %v145
      %v148 = vadd.f32 %v138, %v146
      %vm149 = vcmp.lt.f32.partialorder %v147, 0.99
      %vm150 = vcmp.lt.f32.partialorder %v148, 0.99
      %v151 = vsel %vm149, 1, 0
      %v152 = vsel %vm150, 1, 0
      %v153 = vsel %vm37, %v151, 0
      %v154 = vsel %vm37, %v152, 0
      %v155 = vadd.s32 %v153, %v154
      %v156 = vand.u32 %v155, 65535
      %v157 = vshrl.u32 %v155, 16
      %v158 = vcvt.s32.f32 %v156
      %v159 = vcvt.s32.f32 %v157
      %160 = vadd.xlane.f32.xlu0 %v158
      %v161 = vpop.xlane.xlu0 %160
      %162 = vadd.xlane.f32.xlu0 %v159
      %v163 = vpop.xlane.xlu0 %162
      %v164 = vcvt.f32.s32 %v161
      %v165 = vcvt.f32.s32 %v163
      %v166 = vshll.u32 %v165, 16
      %v167 = vadd.s32 %v166, %v164
      %v168 = vrot.slane %v167, 4
      %v169 = vadd.s32 %v167, %v168
      %v170 = vrot.slane %v169, 2
      %v171 = vadd.s32 %v169, %v170
      %v172 = vrot.slane %v171, 1
      %v173 = vadd.s32 %v171, %v172
      %s174 = vtos %v173
      %175 = sst [smem:[%s67]] %s174
      %v176 = vld [vmem:[#allocation5] sm:$0xff]
      %v177 = vld [vmem:[#allocation5 + $0x8] sm:$0xff]
      %v178 = vadd.f32 %v176, %v133
      %v179 = vadd.f32 %v177, %v134
      %v180 = vadd.f32 %v178, %v125
      %v181 = vadd.f32 %v179, %v126
      %182 = vst.msk [vmem:[#allocation5] sm:$0xff] %vm37, %v180
      %183 = vst.msk [vmem:[#allocation5 + $0x8] sm:$0xff] %vm37, %v181
      %v184 = vpack.c.bf16 %v76, %v75
      %v185 = vld [vmem:[%s1] sm:$0xff]
      %v186 = vld [vmem:[%s1 + $0x8] sm:$0xff]
      %v187 = vld [vmem:[%s1 + $0x10] sm:$0xff]
      %v188 = vld [vmem:[%s1 + $0x18] sm:$0xff]
      %v189 = vld [vmem:[%s1 + $0x20] sm:$0xff]
      %v190 = vld [vmem:[%s1 + $0x28] sm:$0xff]
      %v191 = vld [vmem:[%s1 + $0x30] sm:$0xff]
      %v192 = vld [vmem:[%s1 + $0x38] sm:$0xff]
      %v193 = vld [vmem:[%s1 + $0x40] sm:$0xff]
      %v194 = vld [vmem:[%s1 + $0x48] sm:$0xff]
      %v195 = vld [vmem:[%s1 + $0x50] sm:$0xff]
      %v196 = vld [vmem:[%s1 + $0x58] sm:$0xff]
      %v197 = vld [vmem:[%s1 + $0x60] sm:$0xff]
      %v198 = vld [vmem:[%s1 + $0x68] sm:$0xff]
      %v199 = vld [vmem:[%s1 + $0x70] sm:$0xff]
      %v200 = vld [vmem:[%s1 + $0x78] sm:$0xff]
      %v201 = vld [vmem:[%s2] sm:$0x3]
      %v203 = vlaneseq
      %v204 = vshrl.u32 %v203, 7
      %v205 = vsub.s32 0, %v204
      %v206 = vrot.slane %v201, %v205
      %v207 = vlaneseq
      %v208 = vshrl.u32 %v207, 7
      %v209 = vsub.s32 1, %v208
      %v210 = vrot.slane %v201, %v209
      %v229 = vunpack.c.l.b16 %v185
      %v230 = vunpack.c.h.b16 %v185
      %v231 = vunpack.c.l.b16 %v186
      %v232 = vunpack.c.h.b16 %v186
      %v233 = vunpack.c.l.b16 %v187
      %v234 = vunpack.c.h.b16 %v187
      %v235 = vunpack.c.l.b16 %v188
      %v236 = vunpack.c.h.b16 %v188
      %v237 = vunpack.c.l.b16 %v189
      %v238 = vunpack.c.h.b16 %v189
      %v239 = vunpack.c.l.b16 %v190
      %v240 = vunpack.c.h.b16 %v190
      %v241 = vunpack.c.l.b16 %v191
      %v242 = vunpack.c.h.b16 %v191
      %v243 = vunpack.c.l.b16 %v192
      %v244 = vunpack.c.h.b16 %v192
      %v245 = vunpack.c.l.b16 %v193
      %v246 = vunpack.c.h.b16 %v193
      %v247 = vunpack.c.l.b16 %v194
      %v248 = vunpack.c.h.b16 %v194
      %v249 = vunpack.c.l.b16 %v195
      %v250 = vunpack.c.h.b16 %v195
      %v251 = vunpack.c.l.b16 %v196
      %v252 = vunpack.c.h.b16 %v196
      %v253 = vunpack.c.l.b16 %v197
      %v254 = vunpack.c.h.b16 %v197
      %v255 = vunpack.c.l.b16 %v198
      %v256 = vunpack.c.h.b16 %v198
      %v257 = vunpack.c.l.b16 %v199
      %v258 = vunpack.c.h.b16 %v199
      %v259 = vunpack.c.l.b16 %v200
      %v260 = vunpack.c.h.b16 %v200
      %v261 = vpack.c.b16 %v231, %v229
      %v262 = vpack.c.b16 %v232, %v230
      %v263 = vpack.c.b16 %v235, %v233
      %v264 = vpack.c.b16 %v236, %v234
      %v265 = vpack.c.b16 %v239, %v237
      %v266 = vpack.c.b16 %v240, %v238
      %v267 = vpack.c.b16 %v243, %v241
      %v268 = vpack.c.b16 %v244, %v242
      %v269 = vpack.c.b16 %v247, %v245
      %v270 = vpack.c.b16 %v248, %v246
      %v271 = vpack.c.b16 %v251, %v249
      %v272 = vpack.c.b16 %v252, %v250
      %v273 = vpack.c.b16 %v255, %v253
      %v274 = vpack.c.b16 %v256, %v254
      %v275 = vpack.c.b16 %v259, %v257
      %v276 = vpack.c.b16 %v260, %v258
      %293 = vmatprep.subr.bf16.mxu0 %v276
      %294 = vmatpush1.bf16.msra.mxu0 %v275
      %295 = vmatprep.subr.bf16.mxu0 %v274
      %296 = vmatpush1.bf16.msra.mxu0 %v273
      %297 = vmatprep.subr.bf16.mxu0 %v272
      %298 = vmatpush1.bf16.msra.mxu0 %v271
      %299 = vmatprep.subr.bf16.mxu0 %v270
      %300 = vmatpush1.bf16.msra.mxu0 %v269
      %301 = vmatprep.subr.bf16.mxu0 %v268
      %302 = vmatpush1.bf16.msra.mxu0 %v267
      %303 = vmatprep.subr.bf16.mxu0 %v266
      %304 = vmatpush1.bf16.msra.mxu0 %v265
      %305 = vmatprep.subr.bf16.mxu0 %v264
      %306 = vmatpush1.bf16.msra.mxu0 %v263
      %307 = vmatprep.subr.bf16.mxu0 %v262
      %308 = vmatpush1.bf16.msra.mxu0 %v261
      %309 = vmatprep.subr.bf16.mxu0 0
      %310 = vmatpush2.bf16.msra.mxu0 0
      %311 = vmatprep.subr.bf16.mxu0 0
      %312 = vmatpush2.bf16.msra.mxu0 0
      %313 = vmatprep.subr.bf16.mxu0 0
      %314 = vmatpush2.bf16.msra.mxu0 0
      %315 = vmatprep.subr.bf16.mxu0 0
      %316 = vmatpush2.bf16.msra.mxu0 0
      %317 = vmatprep.subr.bf16.mxu0 0
      %318 = vmatpush2.bf16.msra.mxu0 0
      %319 = vmatprep.subr.bf16.mxu0 0
      %320 = vmatpush2.bf16.msra.mxu0 0
      %321 = vmatprep.subr.bf16.mxu0 0
      %322 = vmatpush2.bf16.msra.mxu0 0
      %323 = vmatprep.subr.bf16.mxu0 0
      %324 = vmatpush2.bf16.msra.mxu0 0
      %325 = vmatprep.mubr.bf16.mxu0 0
      %326 = vmatmul.mubr.bf16.gmra.mxu0 %v184
      %v327 = vpop.f32.mrf.mxu0
      %v328 = vadd.f32 %v206, %v327
      %v329 = vpop.f32.mrf.mxu0
      %v330 = vadd.f32 %v210, %v329
      %v331 = vpop.f32.mrf.mxu0
      %v332 = vadd.f32 %v206, %v331
      %v333 = vpop.f32.mrf.mxu0
      %v334 = vadd.f32 %v210, %v333
      %335 = vdwg.mxu0
      %v336 = vmax.f32 %v328, 0.0
      %v337 = vmax.f32 %v330, 0.0
      %v338 = vmax.f32 %v332, 0.0
      %v339 = vmax.f32 %v334, 0.0
      %v340 = vpack.c.bf16 %v338, %v336
      %v341 = vpack.c.bf16 %v339, %v337
      %v342 = vld [vmem:[%s3] sm:$0xf]
      %v343 = vld [vmem:[%s3 + $0x4] sm:$0xf]
      %v344 = vld [vmem:[%s3 + $0x8] sm:$0xf]
      %v345 = vld [vmem:[%s3 + $0xc] sm:$0xf]
      %v346 = vld [vmem:[%s3 + $0x10] sm:$0xf]
      %v347 = vld [vmem:[%s3 + $0x14] sm:$0xf]
      %v348 = vld [vmem:[%s3 + $0x18] sm:$0xf]
      %v349 = vld [vmem:[%s3 + $0x1c] sm:$0xf]
      %v350 = vld [vmem:[%s3 + $0x20] sm:$0xf]
      %v351 = vld [vmem:[%s3 + $0x24] sm:$0xf]
      %v352 = vld [vmem:[%s3 + $0x28] sm:$0xf]
      %v353 = vld [vmem:[%s3 + $0x2c] sm:$0xf]
      %v354 = vld [vmem:[%s3 + $0x30] sm:$0xf]
      %v355 = vld [vmem:[%s3 + $0x34] sm:$0xf]
      %v356 = vld [vmem:[%s3 + $0x38] sm:$0xf]
      %v357 = vld [vmem:[%s3 + $0x3c] sm:$0xf]
      %v358 = vld [vmem:[%s3 + $0x40] sm:$0xf]
      %v359 = vld [vmem:[%s3 + $0x44] sm:$0xf]
      %v360 = vld [vmem:[%s3 + $0x48] sm:$0xf]
      %v361 = vld [vmem:[%s3 + $0x4c] sm:$0xf]
      %v362 = vld [vmem:[%s3 + $0x50] sm:$0xf]
      %v363 = vld [vmem:[%s3 + $0x54] sm:$0xf]
      %v364 = vld [vmem:[%s3 + $0x58] sm:$0xf]
      %v365 = vld [vmem:[%s3 + $0x5c] sm:$0xf]
      %v366 = vld [vmem:[%s3 + $0x60] sm:$0xf]
      %v367 = vld [vmem:[%s3 + $0x64] sm:$0xf]
      %v368 = vld [vmem:[%s3 + $0x68] sm:$0xf]
      %v369 = vld [vmem:[%s3 + $0x6c] sm:$0xf]
      %v370 = vld [vmem:[%s3 + $0x70] sm:$0xf]
      %v371 = vld [vmem:[%s3 + $0x74] sm:$0xf]
      %v372 = vld [vmem:[%s3 + $0x78] sm:$0xf]
      %v373 = vld [vmem:[%s3 + $0x7c] sm:$0xf]
      %v374 = vld [vmem:[%s4] sm:$0x1]
      %v376 = vlaneseq
      %v377 = vshrl.u32 %v376, 7
      %v378 = vsub.s32 0, %v377
      %v379 = vrot.slane %v374, %v378
      %v413 = vunpack.c.l.b16 %v342
      %v414 = vunpack.c.l.b16 %v343
      %v415 = vunpack.c.l.b16 %v344
      %v416 = vunpack.c.l.b16 %v345
      %v417 = vunpack.c.l.b16 %v346
      %v418 = vunpack.c.l.b16 %v347
      %v419 = vunpack.c.l.b16 %v348
      %v420 = vunpack.c.l.b16 %v349
      %v421 = vunpack.c.l.b16 %v350
      %v422 = vunpack.c.l.b16 %v351
      %v423 = vunpack.c.l.b16 %v352
      %v424 = vunpack.c.l.b16 %v353
      %v425 = vunpack.c.l.b16 %v354
      %v426 = vunpack.c.l.b16 %v355
      %v427 = vunpack.c.l.b16 %v356
      %v428 = vunpack.c.l.b16 %v357
      %v429 = vunpack.c.l.b16 %v358
      %v430 = vunpack.c.l.b16 %v359
      %v431 = vunpack.c.l.b16 %v360
      %v432 = vunpack.c.l.b16 %v361
      %v433 = vunpack.c.l.b16 %v362
      %v434 = vunpack.c.l.b16 %v363
      %v435 = vunpack.c.l.b16 %v364
      %v436 = vunpack.c.l.b16 %v365
      %v437 = vunpack.c.l.b16 %v366
      %v438 = vunpack.c.l.b16 %v367
      %v439 = vunpack.c.l.b16 %v368
      %v440 = vunpack.c.l.b16 %v369
      %v441 = vunpack.c.l.b16 %v370
      %v442 = vunpack.c.l.b16 %v371
      %v443 = vunpack.c.l.b16 %v372
      %v444 = vunpack.c.l.b16 %v373
      %v445 = vpack.c.b16 %v414, %v413
      %v446 = vpack.c.b16 %v416, %v415
      %v447 = vpack.c.b16 %v418, %v417
      %v448 = vpack.c.b16 %v420, %v419
      %v449 = vpack.c.b16 %v422, %v421
      %v450 = vpack.c.b16 %v424, %v423
      %v451 = vpack.c.b16 %v426, %v425
      %v452 = vpack.c.b16 %v428, %v427
      %v453 = vpack.c.b16 %v430, %v429
      %v454 = vpack.c.b16 %v432, %v431
      %v455 = vpack.c.b16 %v434, %v433
      %v456 = vpack.c.b16 %v436, %v435
      %v457 = vpack.c.b16 %v438, %v437
      %v458 = vpack.c.b16 %v440, %v439
      %v459 = vpack.c.b16 %v442, %v441
      %v460 = vpack.c.b16 %v444, %v443
      %477 = vmatprep.subr.bf16.mxu0 0
      %478 = vmatpush1.bf16.msra.mxu0 %v452
      %479 = vmatprep.subr.bf16.mxu0 0
      %480 = vmatpush1.bf16.msra.mxu0 %v451
      %481 = vmatprep.subr.bf16.mxu0 0
      %482 = vmatpush1.bf16.msra.mxu0 %v450
      %483 = vmatprep.subr.bf16.mxu0 0
      %484 = vmatpush1.bf16.msra.mxu0 %v449
      %485 = vmatprep.subr.bf16.mxu0 0
      %486 = vmatpush1.bf16.msra.mxu0 %v448
      %487 = vmatprep.subr.bf16.mxu0 0
      %488 = vmatpush1.bf16.msra.mxu0 %v447
      %489 = vmatprep.subr.bf16.mxu0 0
      %490 = vmatpush1.bf16.msra.mxu0 %v446
      %491 = vmatprep.subr.bf16.mxu0 0
      %492 = vmatpush1.bf16.msra.mxu0 %v445
      %493 = vmatprep.subr.bf16.mxu0 0
      %494 = vmatpush2.bf16.msra.mxu0 %v460
      %495 = vmatprep.subr.bf16.mxu0 0
      %496 = vmatpush2.bf16.msra.mxu0 %v459
      %497 = vmatprep.subr.bf16.mxu0 0
      %498 = vmatpush2.bf16.msra.mxu0 %v458
      %499 = vmatprep.subr.bf16.mxu0 0
      %500 = vmatpush2.bf16.msra.mxu0 %v457
      %501 = vmatprep.subr.bf16.mxu0 0
      %502 = vmatpush2.bf16.msra.mxu0 %v456
      %503 = vmatprep.subr.bf16.mxu0 0
      %504 = vmatpush2.bf16.msra.mxu0 %v455
      %505 = vmatprep.subr.bf16.mxu0 0
      %506 = vmatpush2.bf16.msra.mxu0 %v454
      %507 = vmatprep.subr.bf16.mxu0 0
      %508 = vmatpush2.bf16.msra.mxu0 %v453
      %509 = vmatprep.mubr.bf16.mxu0 %v341
      %510 = vmatmul.mubr.bf16.gmra.mxu0 %v340
      %v511 = vpop.f32.mrf.mxu0
      %v512 = vadd.f32 %v379, %v511
      %v513 = vpop.f32.mrf.mxu0
      %v514 = vpop.f32.mrf.mxu0
      %v515 = vadd.f32 %v379, %v514
      %v516 = vpop.f32.mrf.mxu0
      %517 = vdwg.mxu0
      %v518 = vadd.f32 %v145, %v135
      %v519 = vadd.f32 %v146, %v136
      %v520 = vld [vmem:[#allocation8] sm:$0xff]
      %v521 = vld [vmem:[#allocation8 + $0x8] sm:$0xff]
      %523 = vset.pattern.permute.xlu0 0
      %524 = vperm.xlu0 %523, %v518
      %v525 = vpop.permute.xlu0 %524
      %528 = vset.pattern.permute.xlu0 0
      %529 = vperm.xlu0 %528, %v519
      %v530 = vpop.permute.xlu0 %529
      %v532 = vmul.f32 %v512, %v525
      %v533 = vmul.f32 %v515, %v530
      %v534 = vadd.f32 %v520, %v532
      %v535 = vadd.f32 %v521, %v533
      %536 = vst [vmem:[#allocation8] sm:$0xff] %v534
      %537 = vst [vmem:[#allocation8 + $0x8] sm:$0xff] %v535
      %538 = vst [vmem:[#allocation2] sm:$0xff] %v512
      %539 = vst [vmem:[#allocation2 + $0x8] sm:$0xff] %v515
      %540 = vst.msk [vmem:[#allocation3] sm:$0xff] %vm37, %v147
      %541 = vst.msk [vmem:[#allocation3 + $0x8] sm:$0xff] %vm37, %v148
      %542 = vst.msk [vmem:[#allocation4] sm:$0xff] %vm37, %v143
      %543 = vst.msk [vmem:[#allocation4 + $0x8] sm:$0xff] %vm37, %v144
    $region33: #{encoder_forward.1} parent=1 // pred_fallthru
      _
    %s544 = sld [smem:[#allocation6]]
    %p545 = scmp.gt.s32.totalorder %s544, 0
    // Predicated region
    $region34: #{encoder_forward.1} parent=1 // pred_check
      %p546 = pneg %p545
    $region35: #{encoder_forward.1} parent=1 // pred_check_branch
      %548 = sbr.rel (%p546) target = $region37
    $region36: #{encoder_forward.1} parent=1 // pred_region
      %v549 = vld [vmem:[#allocation2] sm:$0xff]
      %v550 = vld [vmem:[#allocation2 + $0x8] sm:$0xff]
      %v551 = vld [vmem:[#allocation3] sm:$0xff]
      %v552 = vld [vmem:[#allocation3 + $0x8] sm:$0xff]
      %v553 = vld [vmem:[#allocation4] sm:$0xff]
      %v554 = vld [vmem:[#allocation4 + $0x8] sm:$0xff]
      %v555 = vld [vmem:[%s5] sm:$0x1]
      %v557 = vlaneseq
      %v558 = vshrl.u32 %v557, 7
      %v559 = vsub.s32 0, %v558
      %v560 = vrot.slane %v555, %v559
      %v562 = vmul.f32 %v549, %v560
      %v563 = vmul.f32 %v550, %v560
      %564 = vadd.xlane.f32.xlu0 %v562
      %v565 = vpop.xlane.xlu0 %564
      %566 = vadd.xlane.f32.xlu0 %v563
      %v567 = vpop.xlane.xlu0 %566
      %v568 = vstv %s69
      %v569 = vadd.f32 %v565, %v568
      %v570 = vadd.f32 %v567, %v568
      %v571 = vxor.u32 %v569, 2147483648
      %v572 = vxor.u32 %v570, 2147483648
      %v573 = vmul.f32 %v571, 1.442695
      %v574 = vpow.pop %v573
      %v575 = vmul.f32 %v572, 1.442695
      %v576 = vpow.pop %v575
      %v577 = vadd.f32 %v574, 1.0
      %v578 = vadd.f32 %v576, 1.0
      %v579 = vrcp.pop %v577
      %v580 = vmul.f32 1.0, %v579
      %v581 = vrcp.pop %v578
      %v582 = vmul.f32 1.0, %v581
      %vm583 = vcmp.lt.f32.partialorder %v551, 1.0
      %vm584 = vcmp.lt.f32.partialorder %v552, 1.0
      %v585 = vsel %vm583, 1, 0
      %v586 = vsel %vm584, 1, 0
      %v587 = vcvt.s32.f32 %v585
      %v588 = vcvt.s32.f32 %v586
      %v589 = vmul.f32 %v580, %v587
      %v590 = vmul.f32 %v582, %v588
      %v591 = vadd.f32 %v551, %v589
      %v592 = vadd.f32 %v552, %v590
      %vm593 = vcmp.ge.f32.partialorder %v591, 0.99
      %vm594 = vcmp.ge.f32.partialorder %v592, 0.99
      %v595 = vsel %vm593, 1, 0
      %v596 = vsel %vm594, 1, 0
      %v597 = vcvt.s32.f32 %v595
      %v598 = vcvt.s32.f32 %v596
      %v599 = vmul.f32 %v597, %v587
      %v600 = vmul.f32 %v598, %v588
      %vm601 = vcmp.lt.f32.partialorder %v591, 0.99
      %vm602 = vcmp.lt.f32.partialorder %v592, 0.99
      %v603 = vsel %vm601, 1, 0
      %v604 = vsel %vm602, 1, 0
      %v605 = vcvt.s32.f32 %v603
      %v606 = vcvt.s32.f32 %v604
      %v607 = vmul.f32 %v605, %v587
      %v608 = vmul.f32 %v606, %v588
      %v609 = vmul.f32 %v607, %v580
      %v610 = vmul.f32 %v608, %v582
      %v611 = vadd.f32 %v551, %v609
      %v612 = vadd.f32 %v552, %v610
      %v613 = vsub.f32 1.0, %v611
      %v614 = vsub.f32 1.0, %v612
      %v615 = vmul.f32 %v599, %v613
      %v616 = vmul.f32 %v600, %v614
      %v617 = vadd.f32 %v553, %v615
      %v618 = vadd.f32 %v554, %v616
      %v619 = vmul.f32 %v599, %v617
      %v620 = vmul.f32 %v600, %v618
      %v621 = vadd.f32 %v611, %v619
      %v622 = vadd.f32 %v612, %v620
      %vm623 = vcmp.lt.f32.partialorder %v621, 0.99
      %vm624 = vcmp.lt.f32.partialorder %v622, 0.99
      %v625 = vsel %vm623, 1, 0
      %v626 = vsel %vm624, 1, 0
      %v627 = vsel %vm37, %v625, 0
      %v628 = vsel %vm37, %v626, 0
      %v629 = vadd.s32 %v627, %v628
      %v630 = vand.u32 %v629, 65535
      %v631 = vshrl.u32 %v629, 16
      %v632 = vcvt.s32.f32 %v630
      %v633 = vcvt.s32.f32 %v631
      %634 = vadd.xlane.f32.xlu0 %v632
      %v635 = vpop.xlane.xlu0 %634
      %636 = vadd.xlane.f32.xlu0 %v633
      %v637 = vpop.xlane.xlu0 %636
      %v638 = vcvt.f32.s32 %v635
      %v639 = vcvt.f32.s32 %v637
      %v640 = vshll.u32 %v639, 16
      %v641 = vadd.s32 %v640, %v638
      %v642 = vrot.slane %v641, 4
      %v643 = vadd.s32 %v641, %v642
      %v644 = vrot.slane %v643, 2
      %v645 = vadd.s32 %v643, %v644
      %v646 = vrot.slane %v645, 1
      %v647 = vadd.s32 %v645, %v646
      %s648 = vtos %v647
      %649 = sst [smem:[%s67]] %s648
      %v650 = vld [vmem:[#allocation5] sm:$0xff]
      %v651 = vld [vmem:[#allocation5 + $0x8] sm:$0xff]
      %v652 = vadd.f32 %v650, %v607
      %v653 = vadd.f32 %v651, %v608
      %v654 = vadd.f32 %v652, %v599
      %v655 = vadd.f32 %v653, %v600
      %656 = vst.msk [vmem:[#allocation5] sm:$0xff] %vm37, %v654
      %657 = vst.msk [vmem:[#allocation5 + $0x8] sm:$0xff] %vm37, %v655
      %v658 = vpack.c.bf16 %v550, %v549
      %v659 = vld [vmem:[%s1] sm:$0xff]
      %v660 = vld [vmem:[%s1 + $0x8] sm:$0xff]
      %v661 = vld [vmem:[%s1 + $0x10] sm:$0xff]
      %v662 = vld [vmem:[%s1 + $0x18] sm:$0xff]
      %v663 = vld [vmem:[%s1 + $0x20] sm:$0xff]
      %v664 = vld [vmem:[%s1 + $0x28] sm:$0xff]
      %v665 = vld [vmem:[%s1 + $0x30] sm:$0xff]
      %v666 = vld [vmem:[%s1 + $0x38] sm:$0xff]
      %v667 = vld [vmem:[%s1 + $0x40] sm:$0xff]
      %v668 = vld [vmem:[%s1 + $0x48] sm:$0xff]
      %v669 = vld [vmem:[%s1 + $0x50] sm:$0xff]
      %v670 = vld [vmem:[%s1 + $0x58] sm:$0xff]
      %v671 = vld [vmem:[%s1 + $0x60] sm:$0xff]
      %v672 = vld [vmem:[%s1 + $0x68] sm:$0xff]
      %v673 = vld [vmem:[%s1 + $0x70] sm:$0xff]
      %v674 = vld [vmem:[%s1 + $0x78] sm:$0xff]
      %v675 = vld [vmem:[%s2] sm:$0x3]
      %v677 = vlaneseq
      %v678 = vshrl.u32 %v677, 7
      %v679 = vsub.s32 0, %v678
      %v680 = vrot.slane %v675, %v679
      %v681 = vlaneseq
      %v682 = vshrl.u32 %v681, 7
      %v683 = vsub.s32 1, %v682
      %v684 = vrot.slane %v675, %v683
      %v703 = vunpack.c.l.b16 %v659
      %v704 = vunpack.c.h.b16 %v659
      %v705 = vunpack.c.l.b16 %v660
      %v706 = vunpack.c.h.b16 %v660
      %v707 = vunpack.c.l.b16 %v661
      %v708 = vunpack.c.h.b16 %v661
      %v709 = vunpack.c.l.b16 %v662
      %v710 = vunpack.c.h.b16 %v662
      %v711 = vunpack.c.l.b16 %v663
      %v712 = vunpack.c.h.b16 %v663
      %v713 = vunpack.c.l.b16 %v664
      %v714 = vunpack.c.h.b16 %v664
      %v715 = vunpack.c.l.b16 %v665
      %v716 = vunpack.c.h.b16 %v665
      %v717 = vunpack.c.l.b16 %v666
      %v718 = vunpack.c.h.b16 %v666
      %v719 = vunpack.c.l.b16 %v667
      %v720 = vunpack.c.h.b16 %v667
      %v721 = vunpack.c.l.b16 %v668
      %v722 = vunpack.c.h.b16 %v668
      %v723 = vunpack.c.l.b16 %v669
      %v724 = vunpack.c.h.b16 %v669
      %v725 = vunpack.c.l.b16 %v670
      %v726 = vunpack.c.h.b16 %v670
      %v727 = vunpack.c.l.b16 %v671
      %v728 = vunpack.c.h.b16 %v671
      %v729 = vunpack.c.l.b16 %v672
      %v730 = vunpack.c.h.b16 %v672
      %v731 = vunpack.c.l.b16 %v673
      %v732 = vunpack.c.h.b16 %v673
      %v733 = vunpack.c.l.b16 %v674
      %v734 = vunpack.c.h.b16 %v674
      %v735 = vpack.c.b16 %v705, %v703
      %v736 = vpack.c.b16 %v706, %v704
      %v737 = vpack.c.b16 %v709, %v707
      %v738 = vpack.c.b16 %v710, %v708
      %v739 = vpack.c.b16 %v713, %v711
      %v740 = vpack.c.b16 %v714, %v712
      %v741 = vpack.c.b16 %v717, %v715
      %v742 = vpack.c.b16 %v718, %v716
      %v743 = vpack.c.b16 %v721, %v719
      %v744 = vpack.c.b16 %v722, %v720
      %v745 = vpack.c.b16 %v725, %v723
      %v746 = vpack.c.b16 %v726, %v724
      %v747 = vpack.c.b16 %v729, %v727
      %v748 = vpack.c.b16 %v730, %v728
      %v749 = vpack.c.b16 %v733, %v731
      %v750 = vpack.c.b16 %v734, %v732
      %767 = vmatprep.subr.bf16.mxu0 %v750
      %768 = vmatpush1.bf16.msra.mxu0 %v749
      %769 = vmatprep.subr.bf16.mxu0 %v748
      %770 = vmatpush1.bf16.msra.mxu0 %v747
      %771 = vmatprep.subr.bf16.mxu0 %v746
      %772 = vmatpush1.bf16.msra.mxu0 %v745
      %773 = vmatprep.subr.bf16.mxu0 %v744
      %774 = vmatpush1.bf16.msra.mxu0 %v743
      %775 = vmatprep.subr.bf16.mxu0 %v742
      %776 = vmatpush1.bf16.msra.mxu0 %v741
      %777 = vmatprep.subr.bf16.mxu0 %v740
      %778 = vmatpush1.bf16.msra.mxu0 %v739
      %779 = vmatprep.subr.bf16.mxu0 %v738
      %780 = vmatpush1.bf16.msra.mxu0 %v737
      %781 = vmatprep.subr.bf16.mxu0 %v736
      %782 = vmatpush1.bf16.msra.mxu0 %v735
      %783 = vmatprep.subr.bf16.mxu0 0
      %784 = vmatpush2.bf16.msra.mxu0 0
      %785 = vmatprep.subr.bf16.mxu0 0
      %786 = vmatpush2.bf16.msra.mxu0 0
      %787 = vmatprep.subr.bf16.mxu0 0
      %788 = vmatpush2.bf16.msra.mxu0 0
      %789 = vmatprep.subr.bf16.mxu0 0
      %790 = vmatpush2.bf16.msra.mxu0 0
      %791 = vmatprep.subr.bf16.mxu0 0
      %792 = vmatpush2.bf16.msra.mxu0 0
      %793 = vmatprep.subr.bf16.mxu0 0
      %794 = vmatpush2.bf16.msra.mxu0 0
      %795 = vmatprep.subr.bf16.mxu0 0
      %796 = vmatpush2.bf16.msra.mxu0 0
      %797 = vmatprep.subr.bf16.mxu0 0
      %798 = vmatpush2.bf16.msra.mxu0 0
      %799 = vmatprep.mubr.bf16.mxu0 0
      %800 = vmatmul.mubr.bf16.gmra.mxu0 %v658
      %v801 = vpop.f32.mrf.mxu0
      %v802 = vadd.f32 %v680, %v801
      %v803 = vpop.f32.mrf.mxu0
      %v804 = vadd.f32 %v684, %v803
      %v805 = vpop.f32.mrf.mxu0
      %v806 = vadd.f32 %v680, %v805
      %v807 = vpop.f32.mrf.mxu0
      %v808 = vadd.f32 %v684, %v807
      %809 = vdwg.mxu0
      %v810 = vmax.f32 %v802, 0.0
      %v811 = vmax.f32 %v804, 0.0
      %v812 = vmax.f32 %v806, 0.0
      %v813 = vmax.f32 %v808, 0.0
      %v814 = vpack.c.bf16 %v812, %v810
      %v815 = vpack.c.bf16 %v813, %v811
      %v816 = vld [vmem:[%s3] sm:$0xf]
      %v817 = vld [vmem:[%s3 + $0x4] sm:$0xf]
      %v818 = vld [vmem:[%s3 + $0x8] sm:$0xf]
      %v819 = vld [vmem:[%s3 + $0xc] sm:$0xf]
      %v820 = vld [vmem:[%s3 + $0x10] sm:$0xf]
      %v821 = vld [vmem:[%s3 + $0x14] sm:$0xf]
      %v822 = vld [vmem:[%s3 + $0x18] sm:$0xf]
      %v823 = vld [vmem:[%s3 + $0x1c] sm:$0xf]
      %v824 = vld [vmem:[%s3 + $0x20] sm:$0xf]
      %v825 = vld [vmem:[%s3 + $0x24] sm:$0xf]
      %v826 = vld [vmem:[%s3 + $0x28] sm:$0xf]
      %v827 = vld [vmem:[%s3 + $0x2c] sm:$0xf]
      %v828 = vld [vmem:[%s3 + $0x30] sm:$0xf]
      %v829 = vld [vmem:[%s3 + $0x34] sm:$0xf]
      %v830 = vld [vmem:[%s3 + $0x38] sm:$0xf]
      %v831 = vld [vmem:[%s3 + $0x3c] sm:$0xf]
      %v832 = vld [vmem:[%s3 + $0x40] sm:$0xf]
      %v833 = vld [vmem:[%s3 + $0x44] sm:$0xf]
      %v834 = vld [vmem:[%s3 + $0x48] sm:$0xf]
      %v835 = vld [vmem:[%s3 + $0x4c] sm:$0xf]
      %v836 = vld [vmem:[%s3 + $0x50] sm:$0xf]
      %v837 = vld [vmem:[%s3 + $0x54] sm:$0xf]
      %v838 = vld [vmem:[%s3 + $0x58] sm:$0xf]
      %v839 = vld [vmem:[%s3 + $0x5c] sm:$0xf]
      %v840 = vld [vmem:[%s3 + $0x60] sm:$0xf]
      %v841 = vld [vmem:[%s3 + $0x64] sm:$0xf]
      %v842 = vld [vmem:[%s3 + $0x68] sm:$0xf]
      %v843 = vld [vmem:[%s3 + $0x6c] sm:$0xf]
      %v844 = vld [vmem:[%s3 + $0x70] sm:$0xf]
      %v845 = vld [vmem:[%s3 + $0x74] sm:$0xf]
      %v846 = vld [vmem:[%s3 + $0x78] sm:$0xf]
      %v847 = vld [vmem:[%s3 + $0x7c] sm:$0xf]
      %v848 = vld [vmem:[%s4] sm:$0x1]
      %v850 = vlaneseq
      %v851 = vshrl.u32 %v850, 7
      %v852 = vsub.s32 0, %v851
      %v853 = vrot.slane %v848, %v852
      %v887 = vunpack.c.l.b16 %v816
      %v888 = vunpack.c.l.b16 %v817
      %v889 = vunpack.c.l.b16 %v818
      %v890 = vunpack.c.l.b16 %v819
      %v891 = vunpack.c.l.b16 %v820
      %v892 = vunpack.c.l.b16 %v821
      %v893 = vunpack.c.l.b16 %v822
      %v894 = vunpack.c.l.b16 %v823
      %v895 = vunpack.c.l.b16 %v824
      %v896 = vunpack.c.l.b16 %v825
      %v897 = vunpack.c.l.b16 %v826
      %v898 = vunpack.c.l.b16 %v827
      %v899 = vunpack.c.l.b16 %v828
      %v900 = vunpack.c.l.b16 %v829
      %v901 = vunpack.c.l.b16 %v830
      %v902 = vunpack.c.l.b16 %v831
      %v903 = vunpack.c.l.b16 %v832
      %v904 = vunpack.c.l.b16 %v833
      %v905 = vunpack.c.l.b16 %v834
      %v906 = vunpack.c.l.b16 %v835
      %v907 = vunpack.c.l.b16 %v836
      %v908 = vunpack.c.l.b16 %v837
      %v909 = vunpack.c.l.b16 %v838
      %v910 = vunpack.c.l.b16 %v839
      %v911 = vunpack.c.l.b16 %v840
      %v912 = vunpack.c.l.b16 %v841
      %v913 = vunpack.c.l.b16 %v842
      %v914 = vunpack.c.l.b16 %v843
      %v915 = vunpack.c.l.b16 %v844
      %v916 = vunpack.c.l.b16 %v845
      %v917 = vunpack.c.l.b16 %v846
      %v918 = vunpack.c.l.b16 %v847
      %v919 = vpack.c.b16 %v888, %v887
      %v920 = vpack.c.b16 %v890, %v889
      %v921 = vpack.c.b16 %v892, %v891
      %v922 = vpack.c.b16 %v894, %v893
      %v923 = vpack.c.b16 %v896, %v895
      %v924 = vpack.c.b16 %v898, %v897
      %v925 = vpack.c.b16 %v900, %v899
      %v926 = vpack.c.b16 %v902, %v901
      %v927 = vpack.c.b16 %v904, %v903
      %v928 = vpack.c.b16 %v906, %v905
      %v929 = vpack.c.b16 %v908, %v907
      %v930 = vpack.c.b16 %v910, %v909
      %v931 = vpack.c.b16 %v912, %v911
      %v932 = vpack.c.b16 %v914, %v913
      %v933 = vpack.c.b16 %v916, %v915
      %v934 = vpack.c.b16 %v918, %v917
      %951 = vmatprep.subr.bf16.mxu0 0
      %952 = vmatpush1.bf16.msra.mxu0 %v926
      %953 = vmatprep.subr.bf16.mxu0 0
      %954 = vmatpush1.bf16.msra.mxu0 %v925
      %955 = vmatprep.subr.bf16.mxu0 0
      %956 = vmatpush1.bf16.msra.mxu0 %v924
      %957 = vmatprep.subr.bf16.mxu0 0
      %958 = vmatpush1.bf16.msra.mxu0 %v923
      %959 = vmatprep.subr.bf16.mxu0 0
      %960 = vmatpush1.bf16.msra.mxu0 %v922
      %961 = vmatprep.subr.bf16.mxu0 0
      %962 = vmatpush1.bf16.msra.mxu0 %v921
      %963 = vmatprep.subr.bf16.mxu0 0
      %964 = vmatpush1.bf16.msra.mxu0 %v920
      %965 = vmatprep.subr.bf16.mxu0 0
      %966 = vmatpush1.bf16.msra.mxu0 %v919
      %967 = vmatprep.subr.bf16.mxu0 0
      %968 = vmatpush2.bf16.msra.mxu0 %v934
      %969 = vmatprep.subr.bf16.mxu0 0
      %970 = vmatpush2.bf16.msra.mxu0 %v933
      %971 = vmatprep.subr.bf16.mxu0 0
      %972 = vmatpush2.bf16.msra.mxu0 %v932
      %973 = vmatprep.subr.bf16.mxu0 0
      %974 = vmatpush2.bf16.msra.mxu0 %v931
      %975 = vmatprep.subr.bf16.mxu0 0
      %976 = vmatpush2.bf16.msra.mxu0 %v930
      %977 = vmatprep.subr.bf16.mxu0 0
      %978 = vmatpush2.bf16.msra.mxu0 %v929
      %979 = vmatprep.subr.bf16.mxu0 0
      %980 = vmatpush2.bf16.msra.mxu0 %v928
      %981 = vmatprep.subr.bf16.mxu0 0
      %982 = vmatpush2.bf16.msra.mxu0 %v927
      %983 = vmatprep.mubr.bf16.mxu0 %v815
      %984 = vmatmul.mubr.bf16.gmra.mxu0 %v814
      %v985 = vpop.f32.mrf.mxu0
      %v986 = vadd.f32 %v853, %v985
      %v987 = vpop.f32.mrf.mxu0
      %v988 = vpop.f32.mrf.mxu0
      %v989 = vadd.f32 %v853, %v988
      %v990 = vpop.f32.mrf.mxu0
      %991 = vdwg.mxu0
      %v992 = vadd.f32 %v619, %v609
      %v993 = vadd.f32 %v620, %v610
      %v994 = vld [vmem:[#allocation8] sm:$0xff]
      %v995 = vld [vmem:[#allocation8 + $0x8] sm:$0xff]
      %997 = vset.pattern.permute.xlu0 0
      %998 = vperm.xlu0 %997, %v992
      %v999 = vpop.permute.xlu0 %998
      %1002 = vset.pattern.permute.xlu0 0
      %1003 = vperm.xlu0 %1002, %v993
      %v1004 = vpop.permute.xlu0 %1003
      %v1006 = vmul.f32 %v986, %v999
      %v1007 = vmul.f32 %v989, %v1004
      %v1008 = vadd.f32 %v994, %v1006
      %v1009 = vadd.f32 %v995, %v1007
      %1010 = vst [vmem:[#allocation8] sm:$0xff] %v1008
      %1011 = vst [vmem:[#allocation8 + $0x8] sm:$0xff] %v1009
      %1012 = vst [vmem:[#allocation2] sm:$0xff] %v986
      %1013 = vst [vmem:[#allocation2 + $0x8] sm:$0xff] %v989
      %1014 = vst.msk [vmem:[#allocation3] sm:$0xff] %vm37, %v621
      %1015 = vst.msk [vmem:[#allocation3 + $0x8] sm:$0xff] %vm37, %v622
      %1016 = vst.msk [vmem:[#allocation4] sm:$0xff] %vm37, %v617
      %1017 = vst.msk [vmem:[#allocation4 + $0x8] sm:$0xff] %vm37, %v618
    $region37: #{encoder_forward.1} parent=1 // pred_fallthru
      _
    %s1018 = sld [smem:[#allocation6]]
    %p1019 = scmp.gt.s32.totalorder %s1018, 0
    // Predicated region
    $region38: #{encoder_forward.1} parent=1 // pred_check
      %p1020 = pneg %p1019
    $region39: #{encoder_forward.1} parent=1 // pred_check_branch
      %1022 = sbr.rel (%p1020) target = $region41
    $region40: #{encoder_forward.1} parent=1 // pred_region
      %v1023 = vld [vmem:[#allocation2] sm:$0xff]
      %v1024 = vld [vmem:[#allocation2 + $0x8] sm:$0xff]
      %v1025 = vld [vmem:[#allocation3] sm:$0xff]
      %v1026 = vld [vmem:[#allocation3 + $0x8] sm:$0xff]
      %v1027 = vld [vmem:[#allocation4] sm:$0xff]
      %v1028 = vld [vmem:[#allocation4 + $0x8] sm:$0xff]
      %v1029 = vld [vmem:[%s5] sm:$0x1]
      %v1031 = vlaneseq
      %v1032 = vshrl.u32 %v1031, 7
      %v1033 = vsub.s32 0, %v1032
      %v1034 = vrot.slane %v1029, %v1033
      %v1036 = vmul.f32 %v1023, %v1034
      %v1037 = vmul.f32 %v1024, %v1034
      %1038 = vadd.xlane.f32.xlu0 %v1036
      %v1039 = vpop.xlane.xlu0 %1038
      %1040 = vadd.xlane.f32.xlu0 %v1037
      %v1041 = vpop.xlane.xlu0 %1040
      %v1042 = vstv %s69
      %v1043 = vadd.f32 %v1039, %v1042
      %v1044 = vadd.f32 %v1041, %v1042
      %v1045 = vxor.u32 %v1043, 2147483648
      %v1046 = vxor.u32 %v1044, 2147483648
      %v1047 = vmul.f32 %v1045, 1.442695
      %v1048 = vpow.pop %v1047
      %v1049 = vmul.f32 %v1046, 1.442695
      %v1050 = vpow.pop %v1049
      %v1051 = vadd.f32 %v1048, 1.0
      %v1052 = vadd.f32 %v1050, 1.0
      %v1053 = vrcp.pop %v1051
      %v1054 = vmul.f32 1.0, %v1053
      %v1055 = vrcp.pop %v1052
      %v1056 = vmul.f32 1.0, %v1055
      %vm1057 = vcmp.lt.f32.partialorder %v1025, 1.0
      %vm1058 = vcmp.lt.f32.partialorder %v1026, 1.0
      %v1059 = vsel %vm1057, 1, 0
      %v1060 = vsel %vm1058, 1, 0
      %v1061 = vcvt.s32.f32 %v1059
      %v1062 = vcvt.s32.f32 %v1060
      %v1063 = vmul.f32 %v1054, %v1061
      %v1064 = vmul.f32 %v1056, %v1062
      %v1065 = vadd.f32 %v1025, %v1063
      %v1066 = vadd.f32 %v1026, %v1064
      %vm1067 = vcmp.ge.f32.partialorder %v1065, 0.99
      %vm1068 = vcmp.ge.f32.partialorder %v1066, 0.99
      %v1069 = vsel %vm1067, 1, 0
      %v1070 = vsel %vm1068, 1, 0
      %v1071 = vcvt.s32.f32 %v1069
      %v1072 = vcvt.s32.f32 %v1070
      %v1073 = vmul.f32 %v1071, %v1061
      %v1074 = vmul.f32 %v1072, %v1062
      %vm1075 = vcmp.lt.f32.partialorder %v1065, 0.99
      %vm1076 = vcmp.lt.f32.partialorder %v1066, 0.99
      %v1077 = vsel %vm1075, 1, 0
      %v1078 = vsel %vm1076, 1, 0
      %v1079 = vcvt.s32.f32 %v1077
      %v1080 = vcvt.s32.f32 %v1078
      %v1081 = vmul.f32 %v1079, %v1061
      %v1082 = vmul.f32 %v1080, %v1062
      %v1083 = vmul.f32 %v1081, %v1054
      %v1084 = vmul.f32 %v1082, %v1056
      %v1085 = vadd.f32 %v1025, %v1083
      %v1086 = vadd.f32 %v1026, %v1084
      %v1087 = vsub.f32 1.0, %v1085
      %v1088 = vsub.f32 1.0, %v1086
      %v1089 = vmul.f32 %v1073, %v1087
      %v1090 = vmul.f32 %v1074, %v1088
      %v1091 = vadd.f32 %v1027, %v1089
      %v1092 = vadd.f32 %v1028, %v1090
      %v1093 = vmul.f32 %v1073, %v1091
      %v1094 = vmul.f32 %v1074, %v1092
      %v1095 = vadd.f32 %v1085, %v1093
      %v1096 = vadd.f32 %v1086, %v1094
      %vm1097 = vcmp.lt.f32.partialorder %v1095, 0.99
      %vm1098 = vcmp.lt.f32.partialorder %v1096, 0.99
      %v1099 = vsel %vm1097, 1, 0
      %v1100 = vsel %vm1098, 1, 0
      %v1101 = vsel %vm37, %v1099, 0
      %v1102 = vsel %vm37, %v1100, 0
      %v1103 = vadd.s32 %v1101, %v1102
      %v1104 = vand.u32 %v1103, 65535
      %v1105 = vshrl.u32 %v1103, 16
      %v1106 = vcvt.s32.f32 %v1104
      %v1107 = vcvt.s32.f32 %v1105
      %1108 = vadd.xlane.f32.xlu0 %v1106
      %v1109 = vpop.xlane.xlu0 %1108
      %1110 = vadd.xlane.f32.xlu0 %v1107
      %v1111 = vpop.xlane.xlu0 %1110
      %v1112 = vcvt.f32.s32 %v1109
      %v1113 = vcvt.f32.s32 %v1111
      %v1114 = vshll.u32 %v1113, 16
      %v1115 = vadd.s32 %v1114, %v1112
      %v1116 = vrot.slane %v1115, 4
      %v1117 = vadd.s32 %v1115, %v1116
      %v1118 = vrot.slane %v1117, 2
      %v1119 = vadd.s32 %v1117, %v1118
      %v1120 = vrot.slane %v1119, 1
      %v1121 = vadd.s32 %v1119, %v1120
      %s1122 = vtos %v1121
      %1123 = sst [smem:[%s67]] %s1122
      %v1124 = vld [vmem:[#allocation5] sm:$0xff]
      %v1125 = vld [vmem:[#allocation5 + $0x8] sm:$0xff]
      %v1126 = vadd.f32 %v1124, %v1081
      %v1127 = vadd.f32 %v1125, %v1082
      %v1128 = vadd.f32 %v1126, %v1073
      %v1129 = vadd.f32 %v1127, %v1074
      %1130 = vst.msk [vmem:[#allocation5] sm:$0xff] %vm37, %v1128
      %1131 = vst.msk [vmem:[#allocation5 + $0x8] sm:$0xff] %vm37, %v1129
      %v1132 = vpack.c.bf16 %v1024, %v1023
      %v1133 = vld [vmem:[%s1] sm:$0xff]
      %v1134 = vld [vmem:[%s1 + $0x8] sm:$0xff]
      %v1135 = vld [vmem:[%s1 + $0x10] sm:$0xff]
      %v1136 = vld [vmem:[%s1 + $0x18] sm:$0xff]
      %v1137 = vld [vmem:[%s1 + $0x20] sm:$0xff]
      %v1138 = vld [vmem:[%s1 + $0x28] sm:$0xff]
      %v1139 = vld [vmem:[%s1 + $0x30] sm:$0xff]
      %v1140 = vld [vmem:[%s1 + $0x38] sm:$0xff]
      %v1141 = vld [vmem:[%s1 + $0x40] sm:$0xff]
      %v1142 = vld [vmem:[%s1 + $0x48] sm:$0xff]
      %v1143 = vld [vmem:[%s1 + $0x50] sm:$0xff]
      %v1144 = vld [vmem:[%s1 + $0x58] sm:$0xff]
      %v1145 = vld [vmem:[%s1 + $0x60] sm:$0xff]
      %v1146 = vld [vmem:[%s1 + $0x68] sm:$0xff]
      %v1147 = vld [vmem:[%s1 + $0x70] sm:$0xff]
      %v1148 = vld [vmem:[%s1 + $0x78] sm:$0xff]
      %v1149 = vld [vmem:[%s2] sm:$0x3]
      %v1151 = vlaneseq
      %v1152 = vshrl.u32 %v1151, 7
      %v1153 = vsub.s32 0, %v1152
      %v1154 = vrot.slane %v1149, %v1153
      %v1155 = vlaneseq
      %v1156 = vshrl.u32 %v1155, 7
      %v1157 = vsub.s32 1, %v1156
      %v1158 = vrot.slane %v1149, %v1157
      %v1177 = vunpack.c.l.b16 %v1133
      %v1178 = vunpack.c.h.b16 %v1133
      %v1179 = vunpack.c.l.b16 %v1134
      %v1180 = vunpack.c.h.b16 %v1134
      %v1181 = vunpack.c.l.b16 %v1135
      %v1182 = vunpack.c.h.b16 %v1135
      %v1183 = vunpack.c.l.b16 %v1136
      %v1184 = vunpack.c.h.b16 %v1136
      %v1185 = vunpack.c.l.b16 %v1137
      %v1186 = vunpack.c.h.b16 %v1137
      %v1187 = vunpack.c.l.b16 %v1138
      %v1188 = vunpack.c.h.b16 %v1138
      %v1189 = vunpack.c.l.b16 %v1139
      %v1190 = vunpack.c.h.b16 %v1139
      %v1191 = vunpack.c.l.b16 %v1140
      %v1192 = vunpack.c.h.b16 %v1140
      %v1193 = vunpack.c.l.b16 %v1141
      %v1194 = vunpack.c.h.b16 %v1141
      %v1195 = vunpack.c.l.b16 %v1142
      %v1196 = vunpack.c.h.b16 %v1142
      %v1197 = vunpack.c.l.b16 %v1143
      %v1198 = vunpack.c.h.b16 %v1143
      %v1199 = vunpack.c.l.b16 %v1144
      %v1200 = vunpack.c.h.b16 %v1144
      %v1201 = vunpack.c.l.b16 %v1145
      %v1202 = vunpack.c.h.b16 %v1145
      %v1203 = vunpack.c.l.b16 %v1146
      %v1204 = vunpack.c.h.b16 %v1146
      %v1205 = vunpack.c.l.b16 %v1147
      %v1206 = vunpack.c.h.b16 %v1147
      %v1207 = vunpack.c.l.b16 %v1148
      %v1208 = vunpack.c.h.b16 %v1148
      %v1209 = vpack.c.b16 %v1179, %v1177
      %v1210 = vpack.c.b16 %v1180, %v1178
      %v1211 = vpack.c.b16 %v1183, %v1181
      %v1212 = vpack.c.b16 %v1184, %v1182
      %v1213 = vpack.c.b16 %v1187, %v1185
      %v1214 = vpack.c.b16 %v1188, %v1186
      %v1215 = vpack.c.b16 %v1191, %v1189
      %v1216 = vpack.c.b16 %v1192, %v1190
      %v1217 = vpack.c.b16 %v1195, %v1193
      %v1218 = vpack.c.b16 %v1196, %v1194
      %v1219 = vpack.c.b16 %v1199, %v1197
      %v1220 = vpack.c.b16 %v1200, %v1198
      %v1221 = vpack.c.b16 %v1203, %v1201
      %v1222 = vpack.c.b16 %v1204, %v1202
      %v1223 = vpack.c.b16 %v1207, %v1205
      %v1224 = vpack.c.b16 %v1208, %v1206
      %1241 = vmatprep.subr.bf16.mxu0 %v1224
      %1242 = vmatpush1.bf16.msra.mxu0 %v1223
      %1243 = vmatprep.subr.bf16.mxu0 %v1222
      %1244 = vmatpush1.bf16.msra.mxu0 %v1221
      %1245 = vmatprep.subr.bf16.mxu0 %v1220
      %1246 = vmatpush1.bf16.msra.mxu0 %v1219
      %1247 = vmatprep.subr.bf16.mxu0 %v1218
      %1248 = vmatpush1.bf16.msra.mxu0 %v1217
      %1249 = vmatprep.subr.bf16.mxu0 %v1216
      %1250 = vmatpush1.bf16.msra.mxu0 %v1215
      %1251 = vmatprep.subr.bf16.mxu0 %v1214
      %1252 = vmatpush1.bf16.msra.mxu0 %v1213
      %1253 = vmatprep.subr.bf16.mxu0 %v1212
      %1254 = vmatpush1.bf16.msra.mxu0 %v1211
      %1255 = vmatprep.subr.bf16.mxu0 %v1210
      %1256 = vmatpush1.bf16.msra.mxu0 %v1209
      %1257 = vmatprep.subr.bf16.mxu0 0
      %1258 = vmatpush2.bf16.msra.mxu0 0
      %1259 = vmatprep.subr.bf16.mxu0 0
      %1260 = vmatpush2.bf16.msra.mxu0 0
      %1261 = vmatprep.subr.bf16.mxu0 0
      %1262 = vmatpush2.bf16.msra.mxu0 0
      %1263 = vmatprep.subr.bf16.mxu0 0
      %1264 = vmatpush2.bf16.msra.mxu0 0
      %1265 = vmatprep.subr.bf16.mxu0 0
      %1266 = vmatpush2.bf16.msra.mxu0 0
      %1267 = vmatprep.subr.bf16.mxu0 0
      %1268 = vmatpush2.bf16.msra.mxu0 0
      %1269 = vmatprep.subr.bf16.mxu0 0
      %1270 = vmatpush2.bf16.msra.mxu0 0
      %1271 = vmatprep.subr.bf16.mxu0 0
      %1272 = vmatpush2.bf16.msra.mxu0 0
      %1273 = vmatprep.mubr.bf16.mxu0 0
      %1274 = vmatmul.mubr.bf16.gmra.mxu0 %v1132
      %v1275 = vpop.f32.mrf.mxu0
      %v1276 = vadd.f32 %v1154, %v1275
      %v1277 = vpop.f32.mrf.mxu0
      %v1278 = vadd.f32 %v1158, %v1277
      %v1279 = vpop.f32.mrf.mxu0
      %v1280 = vadd.f32 %v1154, %v1279
      %v1281 = vpop.f32.mrf.mxu0
      %v1282 = vadd.f32 %v1158, %v1281
      %1283 = vdwg.mxu0
      %v1284 = vmax.f32 %v1276, 0.0
      %v1285 = vmax.f32 %v1278, 0.0
      %v1286 = vmax.f32 %v1280, 0.0
      %v1287 = vmax.f32 %v1282, 0.0
      %v1288 = vpack.c.bf16 %v1286, %v1284
      %v1289 = vpack.c.bf16 %v1287, %v1285
      %v1290 = vld [vmem:[%s3] sm:$0xf]
      %v1291 = vld [vmem:[%s3 + $0x4] sm:$0xf]
      %v1292 = vld [vmem:[%s3 + $0x8] sm:$0xf]
      %v1293 = vld [vmem:[%s3 + $0xc] sm:$0xf]
      %v1294 = vld [vmem:[%s3 + $0x10] sm:$0xf]
      %v1295 = vld [vmem:[%s3 + $0x14] sm:$0xf]
      %v1296 = vld [vmem:[%s3 + $0x18] sm:$0xf]
      %v1297 = vld [vmem:[%s3 + $0x1c] sm:$0xf]
      %v1298 = vld [vmem:[%s3 + $0x20] sm:$0xf]
      %v1299 = vld [vmem:[%s3 + $0x24] sm:$0xf]
      %v1300 = vld [vmem:[%s3 + $0x28] sm:$0xf]
      %v1301 = vld [vmem:[%s3 + $0x2c] sm:$0xf]
      %v1302 = vld [vmem:[%s3 + $0x30] sm:$0xf]
      %v1303 = vld [vmem:[%s3 + $0x34] sm:$0xf]
      %v1304 = vld [vmem:[%s3 + $0x38] sm:$0xf]
      %v1305 = vld [vmem:[%s3 + $0x3c] sm:$0xf]
      %v1306 = vld [vmem:[%s3 + $0x40] sm:$0xf]
      %v1307 = vld [vmem:[%s3 + $0x44] sm:$0xf]
      %v1308 = vld [vmem:[%s3 + $0x48] sm:$0xf]
      %v1309 = vld [vmem:[%s3 + $0x4c] sm:$0xf]
      %v1310 = vld [vmem:[%s3 + $0x50] sm:$0xf]
      %v1311 = vld [vmem:[%s3 + $0x54] sm:$0xf]
      %v1312 = vld [vmem:[%s3 + $0x58] sm:$0xf]
      %v1313 = vld [vmem:[%s3 + $0x5c] sm:$0xf]
      %v1314 = vld [vmem:[%s3 + $0x60] sm:$0xf]
      %v1315 = vld [vmem:[%s3 + $0x64] sm:$0xf]
      %v1316 = vld [vmem:[%s3 + $0x68] sm:$0xf]
      %v1317 = vld [vmem:[%s3 + $0x6c] sm:$0xf]
      %v1318 = vld [vmem:[%s3 + $0x70] sm:$0xf]
      %v1319 = vld [vmem:[%s3 + $0x74] sm:$0xf]
      %v1320 = vld [vmem:[%s3 + $0x78] sm:$0xf]
      %v1321 = vld [vmem:[%s3 + $0x7c] sm:$0xf]
      %v1322 = vld [vmem:[%s4] sm:$0x1]
      %v1324 = vlaneseq
      %v1325 = vshrl.u32 %v1324, 7
      %v1326 = vsub.s32 0, %v1325
      %v1327 = vrot.slane %v1322, %v1326
      %v1361 = vunpack.c.l.b16 %v1290
      %v1362 = vunpack.c.l.b16 %v1291
      %v1363 = vunpack.c.l.b16 %v1292
      %v1364 = vunpack.c.l.b16 %v1293
      %v1365 = vunpack.c.l.b16 %v1294
      %v1366 = vunpack.c.l.b16 %v1295
      %v1367 = vunpack.c.l.b16 %v1296
      %v1368 = vunpack.c.l.b16 %v1297
      %v1369 = vunpack.c.l.b16 %v1298
      %v1370 = vunpack.c.l.b16 %v1299
      %v1371 = vunpack.c.l.b16 %v1300
      %v1372 = vunpack.c.l.b16 %v1301
      %v1373 = vunpack.c.l.b16 %v1302
      %v1374 = vunpack.c.l.b16 %v1303
      %v1375 = vunpack.c.l.b16 %v1304
      %v1376 = vunpack.c.l.b16 %v1305
      %v1377 = vunpack.c.l.b16 %v1306
      %v1378 = vunpack.c.l.b16 %v1307
      %v1379 = vunpack.c.l.b16 %v1308
      %v1380 = vunpack.c.l.b16 %v1309
      %v1381 = vunpack.c.l.b16 %v1310
      %v1382 = vunpack.c.l.b16 %v1311
      %v1383 = vunpack.c.l.b16 %v1312
      %v1384 = vunpack.c.l.b16 %v1313
      %v1385 = vunpack.c.l.b16 %v1314
      %v1386 = vunpack.c.l.b16 %v1315
      %v1387 = vunpack.c.l.b16 %v1316
      %v1388 = vunpack.c.l.b16 %v1317
      %v1389 = vunpack.c.l.b16 %v1318
      %v1390 = vunpack.c.l.b16 %v1319
      %v1391 = vunpack.c.l.b16 %v1320
      %v1392 = vunpack.c.l.b16 %v1321
      %v1393 = vpack.c.b16 %v1362, %v1361
      %v1394 = vpack.c.b16 %v1364, %v1363
      %v1395 = vpack.c.b16 %v1366, %v1365
      %v1396 = vpack.c.b16 %v1368, %v1367
      %v1397 = vpack.c.b16 %v1370, %v1369
      %v1398 = vpack.c.b16 %v1372, %v1371
      %v1399 = vpack.c.b16 %v1374, %v1373
      %v1400 = vpack.c.b16 %v1376, %v1375
      %v1401 = vpack.c.b16 %v1378, %v1377
      %v1402 = vpack.c.b16 %v1380, %v1379
      %v1403 = vpack.c.b16 %v1382, %v1381
      %v1404 = vpack.c.b16 %v1384, %v1383
      %v1405 = vpack.c.b16 %v1386, %v1385
      %v1406 = vpack.c.b16 %v1388, %v1387
      %v1407 = vpack.c.b16 %v1390, %v1389
      %v1408 = vpack.c.b16 %v1392, %v1391
      %1425 = vmatprep.subr.bf16.mxu0 0
      %1426 = vmatpush1.bf16.msra.mxu0 %v1400
      %1427 = vmatprep.subr.bf16.mxu0 0
      %1428 = vmatpush1.bf16.msra.mxu0 %v1399
      %1429 = vmatprep.subr.bf16.mxu0 0
      %1430 = vmatpush1.bf16.msra.mxu0 %v1398
      %1431 = vmatprep.subr.bf16.mxu0 0
      %1432 = vmatpush1.bf16.msra.mxu0 %v1397
      %1433 = vmatprep.subr.bf16.mxu0 0
      %1434 = vmatpush1.bf16.msra.mxu0 %v1396
      %1435 = vmatprep.subr.bf16.mxu0 0
      %1436 = vmatpush1.bf16.msra.mxu0 %v1395
      %1437 = vmatprep.subr.bf16.mxu0 0
      %1438 = vmatpush1.bf16.msra.mxu0 %v1394
      %1439 = vmatprep.subr.bf16.mxu0 0
      %1440 = vmatpush1.bf16.msra.mxu0 %v1393
      %1441 = vmatprep.subr.bf16.mxu0 0
      %1442 = vmatpush2.bf16.msra.mxu0 %v1408
      %1443 = vmatprep.subr.bf16.mxu0 0
      %1444 = vmatpush2.bf16.msra.mxu0 %v1407
      %1445 = vmatprep.subr.bf16.mxu0 0
      %1446 = vmatpush2.bf16.msra.mxu0 %v1406
      %1447 = vmatprep.subr.bf16.mxu0 0
      %1448 = vmatpush2.bf16.msra.mxu0 %v1405
      %1449 = vmatprep.subr.bf16.mxu0 0
      %1450 = vmatpush2.bf16.msra.mxu0 %v1404
      %1451 = vmatprep.subr.bf16.mxu0 0
      %1452 = vmatpush2.bf16.msra.mxu0 %v1403
      %1453 = vmatprep.subr.bf16.mxu0 0
      %1454 = vmatpush2.bf16.msra.mxu0 %v1402
      %1455 = vmatprep.subr.bf16.mxu0 0
      %1456 = vmatpush2.bf16.msra.mxu0 %v1401
      %1457 = vmatprep.mubr.bf16.mxu0 %v1289
      %1458 = vmatmul.mubr.bf16.gmra.mxu0 %v1288
      %v1459 = vpop.f32.mrf.mxu0
      %v1460 = vadd.f32 %v1327, %v1459
      %v1461 = vpop.f32.mrf.mxu0
      %v1462 = vpop.f32.mrf.mxu0
      %v1463 = vadd.f32 %v1327, %v1462
      %v1464 = vpop.f32.mrf.mxu0
      %1465 = vdwg.mxu0
      %v1466 = vadd.f32 %v1093, %v1083
      %v1467 = vadd.f32 %v1094, %v1084
      %v1468 = vld [vmem:[#allocation8] sm:$0xff]
      %v1469 = vld [vmem:[#allocation8 + $0x8] sm:$0xff]
      %1471 = vset.pattern.permute.xlu0 0
      %1472 = vperm.xlu0 %1471, %v1466
      %v1473 = vpop.permute.xlu0 %1472
      %1476 = vset.pattern.permute.xlu0 0
      %1477 = vperm.xlu0 %1476, %v1467
      %v1478 = vpop.permute.xlu0 %1477
      %v1480 = vmul.f32 %v1460, %v1473
      %v1481 = vmul.f32 %v1463, %v1478
      %v1482 = vadd.f32 %v1468, %v1480
      %v1483 = vadd.f32 %v1469, %v1481
      %1484 = vst [vmem:[#allocation8] sm:$0xff] %v1482
      %1485 = vst [vmem:[#allocation8 + $0x8] sm:$0xff] %v1483
      %1486 = vst [vmem:[#allocation2] sm:$0xff] %v1460
      %1487 = vst [vmem:[#allocation2 + $0x8] sm:$0xff] %v1463
      %1488 = vst.msk [vmem:[#allocation3] sm:$0xff] %vm37, %v1095
      %1489 = vst.msk [vmem:[#allocation3 + $0x8] sm:$0xff] %vm37, %v1096
      %1490 = vst.msk [vmem:[#allocation4] sm:$0xff] %vm37, %v1091
      %1491 = vst.msk [vmem:[#allocation4 + $0x8] sm:$0xff] %vm37, %v1092
    $region41: #{encoder_forward.1} parent=1 // pred_fallthru
      _
    %s1492 = sld [smem:[#allocation6]]
    %p1493 = scmp.gt.s32.totalorder %s1492, 0
    // Predicated region
    $region42: #{encoder_forward.1} parent=1 // pred_check
      %p1494 = pneg %p1493
    $region43: #{encoder_forward.1} parent=1 // pred_check_branch
      %1496 = sbr.rel (%p1494) target = $region45
    $region44: #{encoder_forward.1} parent=1 // pred_region
      %v1497 = vld [vmem:[#allocation2] sm:$0xff]
      %v1498 = vld [vmem:[#allocation2 + $0x8] sm:$0xff]
      %v1499 = vld [vmem:[#allocation3] sm:$0xff]
      %v1500 = vld [vmem:[#allocation3 + $0x8] sm:$0xff]
      %v1501 = vld [vmem:[#allocation4] sm:$0xff]
      %v1502 = vld [vmem:[#allocation4 + $0x8] sm:$0xff]
      %v1503 = vld [vmem:[%s5] sm:$0x1]
      %v1505 = vlaneseq
      %v1506 = vshrl.u32 %v1505, 7
      %v1507 = vsub.s32 0, %v1506
      %v1508 = vrot.slane %v1503, %v1507
      %v1510 = vmul.f32 %v1497, %v1508
      %v1511 = vmul.f32 %v1498, %v1508
      %1512 = vadd.xlane.f32.xlu0 %v1510
      %v1513 = vpop.xlane.xlu0 %1512
      %1514 = vadd.xlane.f32.xlu0 %v1511
      %v1515 = vpop.xlane.xlu0 %1514
      %v1516 = vstv %s69
      %v1517 = vadd.f32 %v1513, %v1516
      %v1518 = vadd.f32 %v1515, %v1516
      %v1519 = vxor.u32 %v1517, 2147483648
      %v1520 = vxor.u32 %v1518, 2147483648
      %v1521 = vmul.f32 %v1519, 1.442695
      %v1522 = vpow.pop %v1521
      %v1523 = vmul.f32 %v1520, 1.442695
      %v1524 = vpow.pop %v1523
      %v1525 = vadd.f32 %v1522, 1.0
      %v1526 = vadd.f32 %v1524, 1.0
      %v1527 = vrcp.pop %v1525
      %v1528 = vmul.f32 1.0, %v1527
      %v1529 = vrcp.pop %v1526
      %v1530 = vmul.f32 1.0, %v1529
      %vm1531 = vcmp.lt.f32.partialorder %v1499, 1.0
      %vm1532 = vcmp.lt.f32.partialorder %v1500, 1.0
      %v1533 = vsel %vm1531, 1, 0
      %v1534 = vsel %vm1532, 1, 0
      %v1535 = vcvt.s32.f32 %v1533
      %v1536 = vcvt.s32.f32 %v1534
      %v1537 = vmul.f32 %v1528, %v1535
      %v1538 = vmul.f32 %v1530, %v1536
      %v1539 = vadd.f32 %v1499, %v1537
      %v1540 = vadd.f32 %v1500, %v1538
      %vm1541 = vcmp.ge.f32.partialorder %v1539, 0.99
      %vm1542 = vcmp.ge.f32.partialorder %v1540, 0.99
      %v1543 = vsel %vm1541, 1, 0
      %v1544 = vsel %vm1542, 1, 0
      %v1545 = vcvt.s32.f32 %v1543
      %v1546 = vcvt.s32.f32 %v1544
      %v1547 = vmul.f32 %v1545, %v1535
      %v1548 = vmul.f32 %v1546, %v1536
      %vm1549 = vcmp.lt.f32.partialorder %v1539, 0.99
      %vm1550 = vcmp.lt.f32.partialorder %v1540, 0.99
      %v1551 = vsel %vm1549, 1, 0
      %v1552 = vsel %vm1550, 1, 0
      %v1553 = vcvt.s32.f32 %v1551
      %v1554 = vcvt.s32.f32 %v1552
      %v1555 = vmul.f32 %v1553, %v1535
      %v1556 = vmul.f32 %v1554, %v1536
      %v1557 = vmul.f32 %v1555, %v1528
      %v1558 = vmul.f32 %v1556, %v1530
      %v1559 = vadd.f32 %v1499, %v1557
      %v1560 = vadd.f32 %v1500, %v1558
      %v1561 = vsub.f32 1.0, %v1559
      %v1562 = vsub.f32 1.0, %v1560
      %v1563 = vmul.f32 %v1547, %v1561
      %v1564 = vmul.f32 %v1548, %v1562
      %v1565 = vadd.f32 %v1501, %v1563
      %v1566 = vadd.f32 %v1502, %v1564
      %v1567 = vmul.f32 %v1547, %v1565
      %v1568 = vmul.f32 %v1548, %v1566
      %v1569 = vadd.f32 %v1559, %v1567
      %v1570 = vadd.f32 %v1560, %v1568
      %vm1571 = vcmp.lt.f32.partialorder %v1569, 0.99
      %vm1572 = vcmp.lt.f32.partialorder %v1570, 0.99
      %v1573 = vsel %vm1571, 1, 0
      %v1574 = vsel %vm1572, 1, 0
      %v1575 = vsel %vm37, %v1573, 0
      %v1576 = vsel %vm37, %v1574, 0
      %v1577 = vadd.s32 %v1575, %v1576
      %v1578 = vand.u32 %v1577, 65535
      %v1579 = vshrl.u32 %v1577, 16
      %v1580 = vcvt.s32.f32 %v1578
      %v1581 = vcvt.s32.f32 %v1579
      %1582 = vadd.xlane.f32.xlu0 %v1580
      %v1583 = vpop.xlane.xlu0 %1582
      %1584 = vadd.xlane.f32.xlu0 %v1581
      %v1585 = vpop.xlane.xlu0 %1584
      %v1586 = vcvt.f32.s32 %v1583
      %v1587 = vcvt.f32.s32 %v1585
      %v1588 = vshll.u32 %v1587, 16
      %v1589 = vadd.s32 %v1588, %v1586
      %v1590 = vrot.slane %v1589, 4
      %v1591 = vadd.s32 %v1589, %v1590
      %v1592 = vrot.slane %v1591, 2
      %v1593 = vadd.s32 %v1591, %v1592
      %v1594 = vrot.slane %v1593, 1
      %v1595 = vadd.s32 %v1593, %v1594
      %s1596 = vtos %v1595
      %1597 = sst [smem:[%s67]] %s1596
      %v1598 = vld [vmem:[#allocation5] sm:$0xff]
      %v1599 = vld [vmem:[#allocation5 + $0x8] sm:$0xff]
      %v1600 = vadd.f32 %v1598, %v1555
      %v1601 = vadd.f32 %v1599, %v1556
      %v1602 = vadd.f32 %v1600, %v1547
      %v1603 = vadd.f32 %v1601, %v1548
      %1604 = vst.msk [vmem:[#allocation5] sm:$0xff] %vm37, %v1602
      %1605 = vst.msk [vmem:[#allocation5 + $0x8] sm:$0xff] %vm37, %v1603
      %v1606 = vpack.c.bf16 %v1498, %v1497
      %v1607 = vld [vmem:[%s1] sm:$0xff]
      %v1608 = vld [vmem:[%s1 + $0x8] sm:$0xff]
      %v1609 = vld [vmem:[%s1 + $0x10] sm:$0xff]
      %v1610 = vld [vmem:[%s1 + $0x18] sm:$0xff]
      %v1611 = vld [vmem:[%s1 + $0x20] sm:$0xff]
      %v1612 = vld [vmem:[%s1 + $0x28] sm:$0xff]
      %v1613 = vld [vmem:[%s1 + $0x30] sm:$0xff]
      %v1614 = vld [vmem:[%s1 + $0x38] sm:$0xff]
      %v1615 = vld [vmem:[%s1 + $0x40] sm:$0xff]
      %v1616 = vld [vmem:[%s1 + $0x48] sm:$0xff]
      %v1617 = vld [vmem:[%s1 + $0x50] sm:$0xff]
      %v1618 = vld [vmem:[%s1 + $0x58] sm:$0xff]
      %v1619 = vld [vmem:[%s1 + $0x60] sm:$0xff]
      %v1620 = vld [vmem:[%s1 + $0x68] sm:$0xff]
      %v1621 = vld [vmem:[%s1 + $0x70] sm:$0xff]
      %v1622 = vld [vmem:[%s1 + $0x78] sm:$0xff]
      %v1623 = vld [vmem:[%s2] sm:$0x3]
      %v1625 = vlaneseq
      %v1626 = vshrl.u32 %v1625, 7
      %v1627 = vsub.s32 0, %v1626
      %v1628 = vrot.slane %v1623, %v1627
      %v1629 = vlaneseq
      %v1630 = vshrl.u32 %v1629, 7
      %v1631 = vsub.s32 1, %v1630
      %v1632 = vrot.slane %v1623, %v1631
      %v1651 = vunpack.c.l.b16 %v1607
      %v1652 = vunpack.c.h.b16 %v1607
      %v1653 = vunpack.c.l.b16 %v1608
      %v1654 = vunpack.c.h.b16 %v1608
      %v1655 = vunpack.c.l.b16 %v1609
      %v1656 = vunpack.c.h.b16 %v1609
      %v1657 = vunpack.c.l.b16 %v1610
      %v1658 = vunpack.c.h.b16 %v1610
      %v1659 = vunpack.c.l.b16 %v1611
      %v1660 = vunpack.c.h.b16 %v1611
      %v1661 = vunpack.c.l.b16 %v1612
      %v1662 = vunpack.c.h.b16 %v1612
      %v1663 = vunpack.c.l.b16 %v1613
      %v1664 = vunpack.c.h.b16 %v1613
      %v1665 = vunpack.c.l.b16 %v1614
      %v1666 = vunpack.c.h.b16 %v1614
      %v1667 = vunpack.c.l.b16 %v1615
      %v1668 = vunpack.c.h.b16 %v1615
      %v1669 = vunpack.c.l.b16 %v1616
      %v1670 = vunpack.c.h.b16 %v1616
      %v1671 = vunpack.c.l.b16 %v1617
      %v1672 = vunpack.c.h.b16 %v1617
      %v1673 = vunpack.c.l.b16 %v1618
      %v1674 = vunpack.c.h.b16 %v1618
      %v1675 = vunpack.c.l.b16 %v1619
      %v1676 = vunpack.c.h.b16 %v1619
      %v1677 = vunpack.c.l.b16 %v1620
      %v1678 = vunpack.c.h.b16 %v1620
      %v1679 = vunpack.c.l.b16 %v1621
      %v1680 = vunpack.c.h.b16 %v1621
      %v1681 = vunpack.c.l.b16 %v1622
      %v1682 = vunpack.c.h.b16 %v1622
      %v1683 = vpack.c.b16 %v1653, %v1651
      %v1684 = vpack.c.b16 %v1654, %v1652
      %v1685 = vpack.c.b16 %v1657, %v1655
      %v1686 = vpack.c.b16 %v1658, %v1656
      %v1687 = vpack.c.b16 %v1661, %v1659
      %v1688 = vpack.c.b16 %v1662, %v1660
      %v1689 = vpack.c.b16 %v1665, %v1663
      %v1690 = vpack.c.b16 %v1666, %v1664
      %v1691 = vpack.c.b16 %v1669, %v1667
      %v1692 = vpack.c.b16 %v1670, %v1668
      %v1693 = vpack.c.b16 %v1673, %v1671
      %v1694 = vpack.c.b16 %v1674, %v1672
      %v1695 = vpack.c.b16 %v1677, %v1675
      %v1696 = vpack.c.b16 %v1678, %v1676
      %v1697 = vpack.c.b16 %v1681, %v1679
      %v1698 = vpack.c.b16 %v1682, %v1680
      %1715 = vmatprep.subr.bf16.mxu0 %v1698
      %1716 = vmatpush1.bf16.msra.mxu0 %v1697
      %1717 = vmatprep.subr.bf16.mxu0 %v1696
      %1718 = vmatpush1.bf16.msra.mxu0 %v1695
      %1719 = vmatprep.subr.bf16.mxu0 %v1694
      %1720 = vmatpush1.bf16.msra.mxu0 %v1693
      %1721 = vmatprep.subr.bf16.mxu0 %v1692
      %1722 = vmatpush1.bf16.msra.mxu0 %v1691
      %1723 = vmatprep.subr.bf16.mxu0 %v1690
      %1724 = vmatpush1.bf16.msra.mxu0 %v1689
      %1725 = vmatprep.subr.bf16.mxu0 %v1688
      %1726 = vmatpush1.bf16.msra.mxu0 %v1687
      %1727 = vmatprep.subr.bf16.mxu0 %v1686
      %1728 = vmatpush1.bf16.msra.mxu0 %v1685
      %1729 = vmatprep.subr.bf16.mxu0 %v1684
      %1730 = vmatpush1.bf16.msra.mxu0 %v1683
      %1731 = vmatprep.subr.bf16.mxu0 0
      %1732 = vmatpush2.bf16.msra.mxu0 0
      %1733 = vmatprep.subr.bf16.mxu0 0
      %1734 = vmatpush2.bf16.msra.mxu0 0
      %1735 = vmatprep.subr.bf16.mxu0 0
      %1736 = vmatpush2.bf16.msra.mxu0 0
      %1737 = vmatprep.subr.bf16.mxu0 0
      %1738 = vmatpush2.bf16.msra.mxu0 0
      %1739 = vmatprep.subr.bf16.mxu0 0
      %1740 = vmatpush2.bf16.msra.mxu0 0
      %1741 = vmatprep.subr.bf16.mxu0 0
      %1742 = vmatpush2.bf16.msra.mxu0 0
      %1743 = vmatprep.subr.bf16.mxu0 0
      %1744 = vmatpush2.bf16.msra.mxu0 0
      %1745 = vmatprep.subr.bf16.mxu0 0
      %1746 = vmatpush2.bf16.msra.mxu0 0
      %1747 = vmatprep.mubr.bf16.mxu0 0
      %1748 = vmatmul.mubr.bf16.gmra.mxu0 %v1606
      %v1749 = vpop.f32.mrf.mxu0
      %v1750 = vadd.f32 %v1628, %v1749
      %v1751 = vpop.f32.mrf.mxu0
      %v1752 = vadd.f32 %v1632, %v1751
      %v1753 = vpop.f32.mrf.mxu0
      %v1754 = vadd.f32 %v1628, %v1753
      %v1755 = vpop.f32.mrf.mxu0
      %v1756 = vadd.f32 %v1632, %v1755
      %1757 = vdwg.mxu0
      %v1758 = vmax.f32 %v1750, 0.0
      %v1759 = vmax.f32 %v1752, 0.0
      %v1760 = vmax.f32 %v1754, 0.0
      %v1761 = vmax.f32 %v1756, 0.0
      %v1762 = vpack.c.bf16 %v1760, %v1758
      %v1763 = vpack.c.bf16 %v1761, %v1759
      %v1764 = vld [vmem:[%s3] sm:$0xf]
      %v1765 = vld [vmem:[%s3 + $0x4] sm:$0xf]
      %v1766 = vld [vmem:[%s3 + $0x8] sm:$0xf]
      %v1767 = vld [vmem:[%s3 + $0xc] sm:$0xf]
      %v1768 = vld [vmem:[%s3 + $0x10] sm:$0xf]
      %v1769 = vld [vmem:[%s3 + $0x14] sm:$0xf]
      %v1770 = vld [vmem:[%s3 + $0x18] sm:$0xf]
      %v1771 = vld [vmem:[%s3 + $0x1c] sm:$0xf]
      %v1772 = vld [vmem:[%s3 + $0x20] sm:$0xf]
      %v1773 = vld [vmem:[%s3 + $0x24] sm:$0xf]
      %v1774 = vld [vmem:[%s3 + $0x28] sm:$0xf]
      %v1775 = vld [vmem:[%s3 + $0x2c] sm:$0xf]
      %v1776 = vld [vmem:[%s3 + $0x30] sm:$0xf]
      %v1777 = vld [vmem:[%s3 + $0x34] sm:$0xf]
      %v1778 = vld [vmem:[%s3 + $0x38] sm:$0xf]
      %v1779 = vld [vmem:[%s3 + $0x3c] sm:$0xf]
      %v1780 = vld [vmem:[%s3 + $0x40] sm:$0xf]
      %v1781 = vld [vmem:[%s3 + $0x44] sm:$0xf]
      %v1782 = vld [vmem:[%s3 + $0x48] sm:$0xf]
      %v1783 = vld [vmem:[%s3 + $0x4c] sm:$0xf]
      %v1784 = vld [vmem:[%s3 + $0x50] sm:$0xf]
      %v1785 = vld [vmem:[%s3 + $0x54] sm:$0xf]
      %v1786 = vld [vmem:[%s3 + $0x58] sm:$0xf]
      %v1787 = vld [vmem:[%s3 + $0x5c] sm:$0xf]
      %v1788 = vld [vmem:[%s3 + $0x60] sm:$0xf]
      %v1789 = vld [vmem:[%s3 + $0x64] sm:$0xf]
      %v1790 = vld [vmem:[%s3 + $0x68] sm:$0xf]
      %v1791 = vld [vmem:[%s3 + $0x6c] sm:$0xf]
      %v1792 = vld [vmem:[%s3 + $0x70] sm:$0xf]
      %v1793 = vld [vmem:[%s3 + $0x74] sm:$0xf]
      %v1794 = vld [vmem:[%s3 + $0x78] sm:$0xf]
      %v1795 = vld [vmem:[%s3 + $0x7c] sm:$0xf]
      %v1796 = vld [vmem:[%s4] sm:$0x1]
      %v1798 = vlaneseq
      %v1799 = vshrl.u32 %v1798, 7
      %v1800 = vsub.s32 0, %v1799
      %v1801 = vrot.slane %v1796, %v1800
      %v1835 = vunpack.c.l.b16 %v1764
      %v1836 = vunpack.c.l.b16 %v1765
      %v1837 = vunpack.c.l.b16 %v1766
      %v1838 = vunpack.c.l.b16 %v1767
      %v1839 = vunpack.c.l.b16 %v1768
      %v1840 = vunpack.c.l.b16 %v1769
      %v1841 = vunpack.c.l.b16 %v1770
      %v1842 = vunpack.c.l.b16 %v1771
      %v1843 = vunpack.c.l.b16 %v1772
      %v1844 = vunpack.c.l.b16 %v1773
      %v1845 = vunpack.c.l.b16 %v1774
      %v1846 = vunpack.c.l.b16 %v1775
      %v1847 = vunpack.c.l.b16 %v1776
      %v1848 = vunpack.c.l.b16 %v1777
      %v1849 = vunpack.c.l.b16 %v1778
      %v1850 = vunpack.c.l.b16 %v1779
      %v1851 = vunpack.c.l.b16 %v1780
      %v1852 = vunpack.c.l.b16 %v1781
      %v1853 = vunpack.c.l.b16 %v1782
      %v1854 = vunpack.c.l.b16 %v1783
      %v1855 = vunpack.c.l.b16 %v1784
      %v1856 = vunpack.c.l.b16 %v1785
      %v1857 = vunpack.c.l.b16 %v1786
      %v1858 = vunpack.c.l.b16 %v1787
      %v1859 = vunpack.c.l.b16 %v1788
      %v1860 = vunpack.c.l.b16 %v1789
      %v1861 = vunpack.c.l.b16 %v1790
      %v1862 = vunpack.c.l.b16 %v1791
      %v1863 = vunpack.c.l.b16 %v1792
      %v1864 = vunpack.c.l.b16 %v1793
      %v1865 = vunpack.c.l.b16 %v1794
      %v1866 = vunpack.c.l.b16 %v1795
      %v1867 = vpack.c.b16 %v1836, %v1835
      %v1868 = vpack.c.b16 %v1838, %v1837
      %v1869 = vpack.c.b16 %v1840, %v1839
      %v1870 = vpack.c.b16 %v1842, %v1841
      %v1871 = vpack.c.b16 %v1844, %v1843
      %v1872 = vpack.c.b16 %v1846, %v1845
      %v1873 = vpack.c.b16 %v1848, %v1847
      %v1874 = vpack.c.b16 %v1850, %v1849
      %v1875 = vpack.c.b16 %v1852, %v1851
      %v1876 = vpack.c.b16 %v1854, %v1853
      %v1877 = vpack.c.b16 %v1856, %v1855
      %v1878 = vpack.c.b16 %v1858, %v1857
      %v1879 = vpack.c.b16 %v1860, %v1859
      %v1880 = vpack.c.b16 %v1862, %v1861
      %v1881 = vpack.c.b16 %v1864, %v1863
      %v1882 = vpack.c.b16 %v1866, %v1865
      %1899 = vmatprep.subr.bf16.mxu0 0
      %1900 = vmatpush1.bf16.msra.mxu0 %v1874
      %1901 = vmatprep.subr.bf16.mxu0 0
      %1902 = vmatpush1.bf16.msra.mxu0 %v1873
      %1903 = vmatprep.subr.bf16.mxu0 0
      %1904 = vmatpush1.bf16.msra.mxu0 %v1872
      %1905 = vmatprep.subr.bf16.mxu0 0
      %1906 = vmatpush1.bf16.msra.mxu0 %v1871
      %1907 = vmatprep.subr.bf16.mxu0 0
      %1908 = vmatpush1.bf16.msra.mxu0 %v1870
      %1909 = vmatprep.subr.bf16.mxu0 0
      %1910 = vmatpush1.bf16.msra.mxu0 %v1869
      %1911 = vmatprep.subr.bf16.mxu0 0
      %1912 = vmatpush1.bf16.msra.mxu0 %v1868
      %1913 = vmatprep.subr.bf16.mxu0 0
      %1914 = vmatpush1.bf16.msra.mxu0 %v1867
      %1915 = vmatprep.subr.bf16.mxu0 0
      %1916 = vmatpush2.bf16.msra.mxu0 %v1882
      %1917 = vmatprep.subr.bf16.mxu0 0
      %1918 = vmatpush2.bf16.msra.mxu0 %v1881
      %1919 = vmatprep.subr.bf16.mxu0 0
      %1920 = vmatpush2.bf16.msra.mxu0 %v1880
      %1921 = vmatprep.subr.bf16.mxu0 0
      %1922 = vmatpush2.bf16.msra.mxu0 %v1879
      %1923 = vmatprep.subr.bf16.mxu0 0
      %1924 = vmatpush2.bf16.msra.mxu0 %v1878
      %1925 = vmatprep.subr.bf16.mxu0 0
      %1926 = vmatpush2.bf16.msra.mxu0 %v1877
      %1927 = vmatprep.subr.bf16.mxu0 0
      %1928 = vmatpush2.bf16.msra.mxu0 %v1876
      %1929 = vmatprep.subr.bf16.mxu0 0
      %1930 = vmatpush2.bf16.msra.mxu0 %v1875
      %1931 = vmatprep.mubr.bf16.mxu0 %v1763
      %1932 = vmatmul.mubr.bf16.gmra.mxu0 %v1762
      %v1933 = vpop.f32.mrf.mxu0
      %v1934 = vadd.f32 %v1801, %v1933
      %v1935 = vpop.f32.mrf.mxu0
      %v1936 = vpop.f32.mrf.mxu0
      %v1937 = vadd.f32 %v1801, %v1936
      %v1938 = vpop.f32.mrf.mxu0
      %1939 = vdwg.mxu0
      %v1940 = vadd.f32 %v1567, %v1557
      %v1941 = vadd.f32 %v1568, %v1558
      %v1942 = vld [vmem:[#allocation8] sm:$0xff]
      %v1943 = vld [vmem:[#allocation8 + $0x8] sm:$0xff]
      %1945 = vset.pattern.permute.xlu0 0
      %1946 = vperm.xlu0 %1945, %v1940
      %v1947 = vpop.permute.xlu0 %1946
      %1950 = vset.pattern.permute.xlu0 0
      %1951 = vperm.xlu0 %1950, %v1941
      %v1952 = vpop.permute.xlu0 %1951
      %v1954 = vmul.f32 %v1934, %v1947
      %v1955 = vmul.f32 %v1937, %v1952
      %v1956 = vadd.f32 %v1942, %v1954
      %v1957 = vadd.f32 %v1943, %v1955
      %1958 = vst [vmem:[#allocation8] sm:$0xff] %v1956
      %1959 = vst [vmem:[#allocation8 + $0x8] sm:$0xff] %v1957
      %1960 = vst [vmem:[#allocation2] sm:$0xff] %v1934
      %1961 = vst [vmem:[#allocation2 + $0x8] sm:$0xff] %v1937
      %1962 = vst.msk [vmem:[#allocation3] sm:$0xff] %vm37, %v1569
      %1963 = vst.msk [vmem:[#allocation3 + $0x8] sm:$0xff] %vm37, %v1570
      %1964 = vst.msk [vmem:[#allocation4] sm:$0xff] %vm37, %v1565
      %1965 = vst.msk [vmem:[#allocation4 + $0x8] sm:$0xff] %vm37, %v1566
    $region45: #{encoder_forward.1} parent=1 // pred_fallthru
      _
    %v1966 = vld [vmem:[#allocation5] sm:$0xff]
    %v1967 = vld [vmem:[#allocation5 + $0x8] sm:$0xff]
    %1968 = vst.msk [vmem:[%s8] sm:$0xff] %vm37, %v1966
    %1969 = vst.msk [vmem:[%s8 + $0x8] sm:$0xff] %vm37, %v1967
    // Predicated region
    $region46: #{encoder_forward.1} parent=1 // pred_check
      _
    $region47: #{encoder_forward.1} parent=1 // pred_check_branch
      %1971 = sbr.rel (0) target = $region49
    $region48: #{encoder_forward.1} parent=1 // pred_region
      %s1973 = ssub.s32 256, 256
      %1974 = vsyncadd [#allocation9], %s1973
      %s1975 = sshll.u32 [#allocation8], 4
      %s1976 = int_to_ptr.vmem [resolvable:$true] %s1975
      %1981 = dma.vmem_to_hbm [thread:$0]  %s1976, 256, %s7, [#allocation9], 128, 128, 8
    $region49: #{encoder_forward.1} parent=1 // pred_fallthru
      _
    // Predicated region
    $region50: #{encoder_forward.1} parent=1 // pred_check
      _
    $region51: #{encoder_forward.1} parent=1 // pred_check_branch
      %1983 = sbr.rel (0) target = $region53
    $region52: #{encoder_forward.1} parent=1 // pred_region
      _
    $region53: #{encoder_forward.1} parent=1 // pred_fallthru
      _
    // Predicated region
    $region54: #{encoder_forward.1} parent=1 // pred_check
      _
    $region55: #{encoder_forward.1} parent=1 // pred_check_branch
      %1985 = sbr.rel (0) target = $region57
    $region56: #{encoder_forward.1} parent=1 // pred_region
      %1986 = dma.done [#allocation9], 256
    $region57: #{encoder_forward.1} parent=1 // pred_fallthru
      _
    // Predicated region
    $region58: #{encoder_forward.1} parent=1 // pred_check
      _
    $region59: #{encoder_forward.1} parent=1 // pred_check_branch
      %1988 = sbr.rel (0) target = $region61
    $region60: #{encoder_forward.1} parent=1 // pred_region
      _
    $region61: #{encoder_forward.1} parent=1 // pred_fallthru
      _
    %1989 = vsyncpa [#allocation9], 1

</llo_original>
